<compile_context>
chip_gen: v7x
topology: tpu7x:2x2x1
jax: 0.10.0
libtpu: 0.0.40
codegen_flags: <defaults>
</compile_context>

<pallas_src>
import functools
import math

import jax
import jax.numpy as jnp
from jax.experimental import pallas as pl
from jax.experimental.pallas import tpu as pltpu


MASK_VALUE = -1e30  # large negative instead of -inf keeps exp()/max() NaN-free


# ---------------------------------------------------------------------------
# Kernel 1: fused QKV projection, head-major outputs, scale folded into q
# ---------------------------------------------------------------------------
def qkv_proj_kernel(x_ref, wq_ref, wk_ref, wv_ref, bq_ref, bk_ref, bv_ref,
                    q_ref, k_ref, v_ref, *, n_head, scale):
    x = x_ref[0].astype(jnp.bfloat16)                      # (block_rows, C) bf16
    hd = q_ref.shape[-1]

    def project(w_ref, b_ref, out_ref, s):
        # One (block_rows, C) f32 accumulator live at a time (no 3C blow-up).
        y = jnp.dot(x, w_ref[...], preferred_element_type=jnp.float32) + b_ref[...]
        if s != 1.0:
            y = y * s
        y = y.astype(out_ref.dtype)
        for h in range(n_head):                            # static loop, aligned slices
            out_ref[0, h] = y[:, h * hd:(h + 1) * hd]

    project(wq_ref, bq_ref, q_ref, scale)                  # fold 1/sqrt(hd) into q once
    project(wk_ref, bk_ref, k_ref, 1.0)
    project(wv_ref, bv_ref, v_ref, 1.0)


# ---------------------------------------------------------------------------
# Kernel 2: flash attention (online softmax) fused with the output projection
# ---------------------------------------------------------------------------
def attn_proj_kernel(q_ref, k_ref, v_ref, wp_ref, bp_ref, o_ref,
                     m_sc, l_sc, acc_sc, oacc_sc,
                     *, block_q, block_kv, hd, causal):
    qi = pl.program_id(1)
    h = pl.program_id(2)
    ki = pl.program_id(3)
    n_heads = pl.num_programs(2)
    n_kv = pl.num_programs(3)

    @pl.when(jnp.logical_and(h == 0, ki == 0))
    def _init_proj_acc():
        oacc_sc[...] = jnp.zeros_like(oacc_sc)

    @pl.when(ki == 0)
    def _init_head():
        m_sc[...] = jnp.full_like(m_sc, -jnp.inf)
        l_sc[...] = jnp.zeros_like(l_sc)
        acc_sc[...] = jnp.zeros_like(acc_sc)

    def _compute():
        q = q_ref[0, 0]                                    # (block_q, hd)  bf16 (pre-scaled)
        k = k_ref[0, 0]                                    # (block_kv, hd) bf16
        # q @ k^T via last-dim contraction (no materialized transpose of K).
        s = jax.lax.dot_general(q, k, (((1,), (1,)), ((), ())),
                                preferred_element_type=jnp.float32)
        if causal:
            row = qi * block_q + jax.lax.broadcasted_iota(jnp.int32, s.shape, 0)
            col = ki * block_kv + jax.lax.broadcasted_iota(jnp.int32, s.shape, 1)
            s = jnp.where(row >= col, s, MASK_VALUE)
        # online softmax update (f32 vector math — v5e-friendly).
        m_prev = m_sc[...]
        m_new = jnp.maximum(m_prev, jnp.max(s, axis=-1, keepdims=True))
        alpha = jnp.exp(m_prev - m_new)
        p = jnp.exp(s - m_new)
        l_sc[...] = alpha * l_sc[...] + jnp.sum(p, axis=-1, keepdims=True)
        acc_sc[...] = alpha * acc_sc[...] + jnp.dot(
            p.astype(jnp.bfloat16), v_ref[0, 0], preferred_element_type=jnp.float32)
        m_sc[...] = m_new

    if causal:
        # Skip kv tiles strictly above the diagonal (~2x fewer attention FLOPs).
        pl.when(ki * block_kv <= qi * block_q + (block_q - 1))(_compute)
    else:
        _compute()

    @pl.when(ki == n_kv - 1)
    def _head_done():
        # Normalize this head and fold it straight into the output projection:
        # W_p stays fully resident (constant-index block); slice its rows per head.
        inv_l = pl.reciprocal(l_sc[...], approx=True)      # EUP slot, ~free
        head_out = (acc_sc[...] * inv_l).astype(jnp.bfloat16)   # (block_q, hd)
        wp_h = wp_ref[pl.ds(pl.multiple_of(h * hd, hd), hd), :]  # (hd, C) bf16
        oacc_sc[...] += jnp.dot(head_out, wp_h, preferred_element_type=jnp.float32)

    @pl.when(jnp.logical_and(h == n_heads - 1, ki == n_kv - 1))
    def _finalize():
        o_ref[0] = (oacc_sc[...] + bp_ref[...]).astype(o_ref.dtype)


# ---------------------------------------------------------------------------
# Helpers
# ---------------------------------------------------------------------------
def _pick_block(total, target):
    """Largest multiple of 8 that divides `total` and is <= target."""
    b = min(total, target)
    b -= b % 8
    while b > 8 and total % b:
        b -= 8
    return b


def _vmem_limit_bytes():
    # Generation-aware scoped-VMEM budget: ~3/4 of physical VMEM
    # (96 MiB on 128-MiB v5e/v6e, 48 MiB on 64-MiB v7x).
    cap = 64 * 1024 * 1024
    try:
        info = pltpu.get_tpu_info()
        cap = int(getattr(info, "vmem_capacity_bytes", cap) or cap)
    except Exception:
        pass
    return int(cap * 3 // 4)


# ---------------------------------------------------------------------------
# Wrapper
# ---------------------------------------------------------------------------
def causal_self_attention(x, params, n_head, *, causal=True,
                          block_q=None, block_kv=None, block_rows=None):
    """Forward pass of the PyTorch CausalSelfAttention module.

    x: (B, T, C) float32.  params: pre-transposed (in, out) weights, (1, out) biases.
    causal=True  -> module called with the standard lower-triangular mask.
    causal=False -> module's default forward (mask=None).
    """
    B, T, C = x.shape
    assert C % n_head == 0
    hd = C // n_head
    assert C % 128 == 0, "n_embd must be a multiple of 128 for lane-dense tiles"
    assert hd % 8 == 0, "head_dim must be a multiple of 8"
    assert T % 8 == 0

    # Large tiles amortize the ~0.35us per-grid-step overhead; sweep per chip.
    block_rows = block_rows or _pick_block(T, 512)
    block_q = block_q or _pick_block(T, 512)
    block_kv = block_kv or _pick_block(T, 512)
    assert T % block_rows == 0 and T % block_q == 0 and T % block_kv == 0

    vmem_limit = _vmem_limit_bytes()
    scale = 1.0 / math.sqrt(hd)

    # bf16 MXU operands; f32 accumulation inside the kernels.
    wq = params["wq"].astype(jnp.bfloat16)
    wk = params["wk"].astype(jnp.bfloat16)
    wv = params["wv"].astype(jnp.bfloat16)
    wp = params["wp"].astype(jnp.bfloat16)
    bq = params["bq"].astype(jnp.float32)
    bk = params["bk"].astype(jnp.float32)
    bv = params["bv"].astype(jnp.float32)
    bp = params["bp"].astype(jnp.float32)

    # Constant-index (resident) weight/bias blocks: single-buffered so they
    # don't double their VMEM footprint; nothing to pipeline for them anyway.
    resident = functools.partial(pl.BlockSpec, pipeline_mode=pl.Buffered(1))

    # ---- 1. fused QKV projection, head-major outputs ------------------------
    q, k, v = pl.pallas_call(
        functools.partial(qkv_proj_kernel, n_head=n_head, scale=scale),
        out_shape=tuple(jax.ShapeDtypeStruct((B, n_head, T, hd), jnp.bfloat16)
                        for _ in range(3)),
        grid_spec=pltpu.PrefetchScalarGridSpec(
            num_scalar_prefetch=0,
            grid=(B, T // block_rows),
            in_specs=[
                pl.BlockSpec((1, block_rows, C), lambda b, t: (b, t, 0)),
                resident((C, C), lambda b, t: (0, 0)),
                resident((C, C), lambda b, t: (0, 0)),
                resident((C, C), lambda b, t: (0, 0)),
                resident((1, C), lambda b, t: (0, 0)),
                resident((1, C), lambda b, t: (0, 0)),
                resident((1, C), lambda b, t: (0, 0)),
            ],
            out_specs=tuple(
                pl.BlockSpec((1, n_head, block_rows, hd), lambda b, t: (b, 0, t, 0))
                for _ in range(3)),
        ),
        compiler_params=pltpu.CompilerParams(
            dimension_semantics=("parallel", "parallel"),
            vmem_limit_bytes=vmem_limit),
    )(x, wq, wk, wv, bq, bk, bv)

    # ---- 2. flash attention fused with the output projection ----------------
    out = pl.pallas_call(
        functools.partial(attn_proj_kernel, block_q=block_q, block_kv=block_kv,
                          hd=hd, causal=causal),
        out_shape=jax.ShapeDtypeStruct((B, T, C), x.dtype),
        grid_spec=pltpu.PrefetchScalarGridSpec(
            num_scalar_prefetch=0,
            grid=(B, T // block_q, n_head, T // block_kv),
            in_specs=[
                pl.BlockSpec((1, 1, block_q, hd), lambda b, qi, h, ki: (b, h, qi, 0)),
                pl.BlockSpec((1, 1, block_kv, hd), lambda b, qi, h, ki: (b, h, ki, 0)),
                pl.BlockSpec((1, 1, block_kv, hd), lambda b, qi, h, ki: (b, h, ki, 0)),
                resident((C, C), lambda b, qi, h, ki: (0, 0)),
                resident((1, C), lambda b, qi, h, ki: (0, 0)),
            ],
            out_specs=pl.BlockSpec((1, block_q, C), lambda b, qi, h, ki: (b, qi, 0)),
            scratch_shapes=[
                pltpu.VMEM((block_q, 1), jnp.float32),    # running max m
                pltpu.VMEM((block_q, 1), jnp.float32),    # running denom l
                pltpu.VMEM((block_q, hd), jnp.float32),   # per-head output acc
                pltpu.VMEM((block_q, C), jnp.float32),    # projected output acc
            ],
        ),
        compiler_params=pltpu.CompilerParams(
            dimension_semantics=("parallel", "parallel", "arbitrary", "arbitrary"),
            vmem_limit_bytes=vmem_limit),
    )(q, k, v, wp, bp)

    return out


# ---------------------------------------------------------------------------
# Pure-JAX f32 reference (PyTorch forward, eval mode)
# ---------------------------------------------------------------------------
def reference_attention(x, params, n_head, causal):
    B, T, C = x.shape
    hd = C // n_head
    q = x @ params["wq"] + params["bq"][0]
    k = x @ params["wk"] + params["bk"][0]
    v = x @ params["wv"] + params["bv"][0]
    q = q.reshape(B, T, n_head, hd).transpose(0, 2, 1, 3)
    k = k.reshape(B, T, n_head, hd).transpose(0, 2, 1, 3)
    v = v.reshape(B, T, n_head, hd).transpose(0, 2, 1, 3)
    att = (q @ jnp.swapaxes(k, -2, -1)) * (1.0 / math.sqrt(hd))
    if causal:
        mask = jnp.tril(jnp.ones((T, T), dtype=bool))
        att = jnp.where(mask[None, None], att, -jnp.inf)
    att = jax.nn.softmax(att, axis=-1)
    y = att @ v
    y = y.transpose(0, 2, 1, 3).reshape(B, T, C)
    return y @ params["wp"] + params["bp"][0]


if __name__ == "__main__":
    # Small but lane-dense config: head_dim = 128, C multiple of 128.
    B, T, C, n_head = 2, 256, 256, 2

    key = jax.random.PRNGKey(0)
    keys = jax.random.split(key, 9)

    def linear_params(kw, kb, fan_in):
        bound = 1.0 / math.sqrt(fan_in)
        # PyTorch Linear weight is (out, in); stored pre-transposed as (in, out).
        w = jax.random.uniform(kw, (C, C), jnp.float32, -bound, bound)
        b = jax.random.uniform(kb, (1, C), jnp.float32, -bound, bound)
        return w, b

    wq, bq = linear_params(keys[0], keys[1], C)
    wk, bk = linear_params(keys[2], keys[3], C)
    wv, bv = linear_params(keys[4], keys[5], C)
    wp, bp = linear_params(keys[6], keys[7], C)
    params = dict(wq=wq, bq=bq, wk=wk, bk=bk, wv=wv, bv=bv, wp=wp, bp=bp)

    x = jax.random.normal(keys[8], (B, T, C), jnp.float32)

    cases = [
        dict(causal=True),                                               # tril mask
        dict(causal=True, block_q=128, block_kv=128, block_rows=128),    # multi-tile path
        dict(causal=False),                                              # mask=None path
    ]
    for cfg in cases:
        out = jax.block_until_ready(causal_self_attention(x, params, n_head, **cfg))
        ref = reference_attention(x, params, n_head, cfg["causal"])
        assert out.shape == (B, T, C)
        # bf16 MXU operands with f32 accumulation -> bf16-level tolerance.
        assert jnp.allclose(out, ref, atol=2e-2, rtol=2e-2), f"mismatch vs ref for {cfg}"

    print("KERNEL_OK")
</pallas_src>

<mosaic_0001>
module attributes {stable_mosaic.version = 11 : i64} {
  func.func @qkv_proj_kernel(%arg0: i32, %arg1: i32, %arg2: memref<1x256x256xf32, #tpu.memory_space<vmem>>, %arg3: memref<256x256xbf16, #tpu.memory_space<vmem>>, %arg4: memref<256x256xbf16, #tpu.memory_space<vmem>>, %arg5: memref<256x256xbf16, #tpu.memory_space<vmem>>, %arg6: memref<1x256xf32, #tpu.memory_space<vmem>>, %arg7: memref<1x256xf32, #tpu.memory_space<vmem>>, %arg8: memref<1x256xf32, #tpu.memory_space<vmem>>, %arg9: memref<1x2x256x128xbf16, #tpu.memory_space<vmem>>, %arg10: memref<1x2x256x128xbf16, #tpu.memory_space<vmem>>, %arg11: memref<1x2x256x128xbf16, #tpu.memory_space<vmem>>) attributes {dimension_semantics = [#tpu.dimension_semantics<parallel>, #tpu.dimension_semantics<parallel>], iteration_bounds = array<i64: 2, 1>, scalar_prefetch = 0 : i64, scratch_operands = 0 : i64, tpu.core_type = #tpu.core_type<tc>, window_params = [{transform_indices = @transform_0, window_bounds = array<i64: 1, 256, 256>}, {pipeline_mode = #tpu.pipeline_mode<synchronous>, transform_indices = @transform_1, window_bounds = array<i64: 256, 256>}, {pipeline_mode = #tpu.pipeline_mode<synchronous>, transform_indices = @transform_2, window_bounds = array<i64: 256, 256>}, {pipeline_mode = #tpu.pipeline_mode<synchronous>, transform_indices = @transform_3, window_bounds = array<i64: 256, 256>}, {pipeline_mode = #tpu.pipeline_mode<synchronous>, transform_indices = @transform_4, window_bounds = array<i64: 1, 256>}, {pipeline_mode = #tpu.pipeline_mode<synchronous>, transform_indices = @transform_5, window_bounds = array<i64: 1, 256>}, {pipeline_mode = #tpu.pipeline_mode<synchronous>, transform_indices = @transform_6, window_bounds = array<i64: 1, 256>}, {transform_indices = @transform_7, window_bounds = array<i64: 1, 2, 256, 128>}, {transform_indices = @transform_8, window_bounds = array<i64: 1, 2, 256, 128>}, {transform_indices = @transform_9, window_bounds = array<i64: 1, 2, 256, 128>}]} {
    %c0 = arith.constant 0 : index
    %c0_0 = arith.constant 0 : index
    %c0_1 = arith.constant 0 : index
    %0 = vector.load %arg2[%c0, %c0_0, %c0_1] : memref<1x256x256xf32, #tpu.memory_space<vmem>>, vector<1x256x256xf32>
    %1 = vector.shape_cast %0 : vector<1x256x256xf32> to vector<256x256xf32>
    %2 = arith.truncf %1 : vector<256x256xf32> to vector<256x256xbf16>
    %c0_2 = arith.constant 0 : index
    %c0_3 = arith.constant 0 : index
    %3 = vector.load %arg3[%c0_2, %c0_3] : memref<256x256xbf16, #tpu.memory_space<vmem>>, vector<256x256xbf16>
    %cst = arith.constant dense<0.000000e+00> : vector<256x256xf32>
    %4 = tpu.matmul %2, %3, %cst {dimension_numbers = #tpu.dot_dimension_numbers<[1], [0], [0], [1], [0, 0, 1, 1], [], []>} : vector<256x256xbf16>, vector<256x256xbf16>, vector<256x256xf32> -> vector<256x256xf32>
    %c0_4 = arith.constant 0 : index
    %c0_5 = arith.constant 0 : index
    %5 = vector.load %arg6[%c0_4, %c0_5] : memref<1x256xf32, #tpu.memory_space<vmem>>, vector<1x256xf32>
    %6 = vector.broadcast %5 : vector<1x256xf32> to vector<256x256xf32>
    %7 = arith.addf %4, %6 : vector<256x256xf32>
    %cst_6 = arith.constant 0.0883883461 : f32
    %8 = vector.broadcast %cst_6 : f32 to vector<256x256xf32>
    %9 = arith.mulf %7, %8 : vector<256x256xf32>
    %10 = arith.truncf %9 : vector<256x256xf32> to vector<256x256xbf16>
    %11 = vector.extract_strided_slice %10 {offsets = [0, 0], sizes = [256, 128], strides = [1, 1]} : vector<256x256xbf16> to vector<256x128xbf16>
    %c0_7 = arith.constant 0 : index
    %c0_8 = arith.constant 0 : index
    %c0_9 = arith.constant 0 : index
    %c0_10 = arith.constant 0 : index
    %12 = vector.load %arg9[%c0_7, %c0_8, %c0_9, %c0_10] : memref<1x2x256x128xbf16, #tpu.memory_space<vmem>>, vector<1x1x256x128xbf16>
    %13 = vector.shape_cast %12 : vector<1x1x256x128xbf16> to vector<256x128xbf16>
    %14 = vector.shape_cast %11 : vector<256x128xbf16> to vector<1x1x256x128xbf16>
    tpu.vector_store %arg9[%c0_7, %c0_8, %c0_9, %c0_10], %14 {strides = array<i32>} : memref<1x2x256x128xbf16, #tpu.memory_space<vmem>>, vector<1x1x256x128xbf16>,
    %15 = vector.extract_strided_slice %10 {offsets = [0, 128], sizes = [256, 128], strides = [1, 1]} : vector<256x256xbf16> to vector<256x128xbf16>
    %c0_11 = arith.constant 0 : index
    %c1 = arith.constant 1 : index
    %c0_12 = arith.constant 0 : index
    %c0_13 = arith.constant 0 : index
    %16 = vector.load %arg9[%c0_11, %c1, %c0_12, %c0_13] : memref<1x2x256x128xbf16, #tpu.memory_space<vmem>>, vector<1x1x256x128xbf16>
    %17 = vector.shape_cast %16 : vector<1x1x256x128xbf16> to vector<256x128xbf16>
    %18 = vector.shape_cast %15 : vector<256x128xbf16> to vector<1x1x256x128xbf16>
    tpu.vector_store %arg9[%c0_11, %c1, %c0_12, %c0_13], %18 {strides = array<i32>} : memref<1x2x256x128xbf16, #tpu.memory_space<vmem>>, vector<1x1x256x128xbf16>,
    %c0_14 = arith.constant 0 : index
    %c0_15 = arith.constant 0 : index
    %19 = vector.load %arg4[%c0_14, %c0_15] : memref<256x256xbf16, #tpu.memory_space<vmem>>, vector<256x256xbf16>
    %cst_16 = arith.constant dense<0.000000e+00> : vector<256x256xf32>
    %20 = tpu.matmul %2, %19, %cst_16 {dimension_numbers = #tpu.dot_dimension_numbers<[1], [0], [0], [1], [0, 0, 1, 1], [], []>} : vector<256x256xbf16>, vector<256x256xbf16>, vector<256x256xf32> -> vector<256x256xf32>
    %c0_17 = arith.constant 0 : index
    %c0_18 = arith.constant 0 : index
    %21 = vector.load %arg7[%c0_17, %c0_18] : memref<1x256xf32, #tpu.memory_space<vmem>>, vector<1x256xf32>
    %22 = vector.broadcast %21 : vector<1x256xf32> to vector<256x256xf32>
    %23 = arith.addf %20, %22 : vector<256x256xf32>
    %24 = arith.truncf %23 : vector<256x256xf32> to vector<256x256xbf16>
    %25 = vector.extract_strided_slice %24 {offsets = [0, 0], sizes = [256, 128], strides = [1, 1]} : vector<256x256xbf16> to vector<256x128xbf16>
    %c0_19 = arith.constant 0 : index
    %c0_20 = arith.constant 0 : index
    %c0_21 = arith.constant 0 : index
    %c0_22 = arith.constant 0 : index
    %26 = vector.load %arg10[%c0_19, %c0_20, %c0_21, %c0_22] : memref<1x2x256x128xbf16, #tpu.memory_space<vmem>>, vector<1x1x256x128xbf16>
    %27 = vector.shape_cast %26 : vector<1x1x256x128xbf16> to vector<256x128xbf16>
    %28 = vector.shape_cast %25 : vector<256x128xbf16> to vector<1x1x256x128xbf16>
    tpu.vector_store %arg10[%c0_19, %c0_20, %c0_21, %c0_22], %28 {strides = array<i32>} : memref<1x2x256x128xbf16, #tpu.memory_space<vmem>>, vector<1x1x256x128xbf16>,
    %29 = vector.extract_strided_slice %24 {offsets = [0, 128], sizes = [256, 128], strides = [1, 1]} : vector<256x256xbf16> to vector<256x128xbf16>
    %c0_23 = arith.constant 0 : index
    %c1_24 = arith.constant 1 : index
    %c0_25 = arith.constant 0 : index
    %c0_26 = arith.constant 0 : index
    %30 = vector.load %arg10[%c0_23, %c1_24, %c0_25, %c0_26] : memref<1x2x256x128xbf16, #tpu.memory_space<vmem>>, vector<1x1x256x128xbf16>
    %31 = vector.shape_cast %30 : vector<1x1x256x128xbf16> to vector<256x128xbf16>
    %32 = vector.shape_cast %29 : vector<256x128xbf16> to vector<1x1x256x128xbf16>
    tpu.vector_store %arg10[%c0_23, %c1_24, %c0_25, %c0_26], %32 {strides = array<i32>} : memref<1x2x256x128xbf16, #tpu.memory_space<vmem>>, vector<1x1x256x128xbf16>,
    %c0_27 = arith.constant 0 : index
    %c0_28 = arith.constant 0 : index
    %33 = vector.load %arg5[%c0_27, %c0_28] : memref<256x256xbf16, #tpu.memory_space<vmem>>, vector<256x256xbf16>
    %cst_29 = arith.constant dense<0.000000e+00> : vector<256x256xf32>
    %34 = tpu.matmul %2, %33, %cst_29 {dimension_numbers = #tpu.dot_dimension_numbers<[1], [0], [0], [1], [0, 0, 1, 1], [], []>} : vector<256x256xbf16>, vector<256x256xbf16>, vector<256x256xf32> -> vector<256x256xf32>
    %c0_30 = arith.constant 0 : index
    %c0_31 = arith.constant 0 : index
    %35 = vector.load %arg8[%c0_30, %c0_31] : memref<1x256xf32, #tpu.memory_space<vmem>>, vector<1x256xf32>
    %36 = vector.broadcast %35 : vector<1x256xf32> to vector<256x256xf32>
    %37 = arith.addf %34, %36 : vector<256x256xf32>
    %38 = arith.truncf %37 : vector<256x256xf32> to vector<256x256xbf16>
    %39 = vector.extract_strided_slice %38 {offsets = [0, 0], sizes = [256, 128], strides = [1, 1]} : vector<256x256xbf16> to vector<256x128xbf16>
    %c0_32 = arith.constant 0 : index
    %c0_33 = arith.constant 0 : index
    %c0_34 = arith.constant 0 : index
    %c0_35 = arith.constant 0 : index
    %40 = vector.load %arg11[%c0_32, %c0_33, %c0_34, %c0_35] : memref<1x2x256x128xbf16, #tpu.memory_space<vmem>>, vector<1x1x256x128xbf16>
    %41 = vector.shape_cast %40 : vector<1x1x256x128xbf16> to vector<256x128xbf16>
    %42 = vector.shape_cast %39 : vector<256x128xbf16> to vector<1x1x256x128xbf16>
    tpu.vector_store %arg11[%c0_32, %c0_33, %c0_34, %c0_35], %42 {strides = array<i32>} : memref<1x2x256x128xbf16, #tpu.memory_space<vmem>>, vector<1x1x256x128xbf16>,
    %43 = vector.extract_strided_slice %38 {offsets = [0, 128], sizes = [256, 128], strides = [1, 1]} : vector<256x256xbf16> to vector<256x128xbf16>
    %c0_36 = arith.constant 0 : index
    %c1_37 = arith.constant 1 : index
    %c0_38 = arith.constant 0 : index
    %c0_39 = arith.constant 0 : index
    %44 = vector.load %arg11[%c0_36, %c1_37, %c0_38, %c0_39] : memref<1x2x256x128xbf16, #tpu.memory_space<vmem>>, vector<1x1x256x128xbf16>
    %45 = vector.shape_cast %44 : vector<1x1x256x128xbf16> to vector<256x128xbf16>
    %46 = vector.shape_cast %43 : vector<256x128xbf16> to vector<1x1x256x128xbf16>
    tpu.vector_store %arg11[%c0_36, %c1_37, %c0_38, %c0_39], %46 {strides = array<i32>} : memref<1x2x256x128xbf16, #tpu.memory_space<vmem>>, vector<1x1x256x128xbf16>,
    return
  }
  func.func @transform_0(%arg0: i32, %arg1: i32) -> (i32, i32, i32) {
    %c0_i32 = arith.constant 0 : i32
    %c0_i32_0 = arith.constant 0 : i32
    return %arg0, %arg1, %c0_i32 : i32, i32, i32
  }
  func.func @transform_1(%arg0: i32, %arg1: i32) -> (i32, i32) {
    %c0_i32 = arith.constant 0 : i32
    %c0_i32_0 = arith.constant 0 : i32
    %c0_i32_1 = arith.constant 0 : i32
    return %c0_i32, %c0_i32_0 : i32, i32
  }
  func.func @transform_2(%arg0: i32, %arg1: i32) -> (i32, i32) {
    %c0_i32 = arith.constant 0 : i32
    %c0_i32_0 = arith.constant 0 : i32
    %c0_i32_1 = arith.constant 0 : i32
    return %c0_i32, %c0_i32_0 : i32, i32
  }
  func.func @transform_3(%arg0: i32, %arg1: i32) -> (i32, i32) {
    %c0_i32 = arith.constant 0 : i32
    %c0_i32_0 = arith.constant 0 : i32
    %c0_i32_1 = arith.constant 0 : i32
    return %c0_i32, %c0_i32_0 : i32, i32
  }
  func.func @transform_4(%arg0: i32, %arg1: i32) -> (i32, i32) {
    %c0_i32 = arith.constant 0 : i32
    %c0_i32_0 = arith.constant 0 : i32
    %c0_i32_1 = arith.constant 0 : i32
    return %c0_i32, %c0_i32_0 : i32, i32
  }
  func.func @transform_5(%arg0: i32, %arg1: i32) -> (i32, i32) {
    %c0_i32 = arith.constant 0 : i32
    %c0_i32_0 = arith.constant 0 : i32
    %c0_i32_1 = arith.constant 0 : i32
    return %c0_i32, %c0_i32_0 : i32, i32
  }
  func.func @transform_6(%arg0: i32, %arg1: i32) -> (i32, i32) {
    %c0_i32 = arith.constant 0 : i32
    %c0_i32_0 = arith.constant 0 : i32
    %c0_i32_1 = arith.constant 0 : i32
    return %c0_i32, %c0_i32_0 : i32, i32
  }
  func.func @transform_7(%arg0: i32, %arg1: i32) -> (i32, i32, i32, i32) {
    %c0_i32 = arith.constant 0 : i32
    %c0_i32_0 = arith.constant 0 : i32
    %c0_i32_1 = arith.constant 0 : i32
    return %arg0, %c0_i32, %arg1, %c0_i32_0 : i32, i32, i32, i32
  }
  func.func @transform_8(%arg0: i32, %arg1: i32) -> (i32, i32, i32, i32) {
    %c0_i32 = arith.constant 0 : i32
    %c0_i32_0 = arith.constant 0 : i32
    %c0_i32_1 = arith.constant 0 : i32
    return %arg0, %c0_i32, %arg1, %c0_i32_0 : i32, i32, i32, i32
  }
  func.func @transform_9(%arg0: i32, %arg1: i32) -> (i32, i32, i32, i32) {
    %c0_i32 = arith.constant 0 : i32
    %c0_i32_0 = arith.constant 0 : i32
    %c0_i32_1 = arith.constant 0 : i32
    return %arg0, %c0_i32, %arg1, %c0_i32_0 : i32, i32, i32, i32
  }
}

</mosaic_0001>

<llo_original>
// kernel: tpu_custom_call.1
$region0: #{tpu_custom_call.1}
  #allocation0 [shape = 'u32[]', space=smem, size = 0x4, offset = 0x4, fixed_abs, tag = 'smem constant byte address 0x4 - core index']
  #allocation1 [shape = 'u32[144,128]{1,0:T(1,128)}', space=vmem, size = 0x12000, scoped, tag = 'internal scratch']
  %s0 = inlined_call_operand.hbm [shape: f32[2,256,256], index: 0, kind: input, shape index: {}]
  %s1 = inlined_call_operand.hbm [shape: bf16[256,256], index: 1, kind: input, shape index: {}]
  %s2 = inlined_call_operand.hbm [shape: bf16[256,256], index: 2, kind: input, shape index: {}]
  %s3 = inlined_call_operand.hbm [shape: bf16[256,256], index: 3, kind: input, shape index: {}]
  %s4 = inlined_call_operand.vmem [shape: f32[1,256], index: 4, kind: input, shape index: {}]
  %s5 = inlined_call_operand.vmem [shape: f32[1,256], index: 5, kind: input, shape index: {}]
  %s6 = inlined_call_operand.vmem [shape: f32[1,256], index: 6, kind: input, shape index: {}]
  %s7 = inlined_call_operand.hbm [shape: bf16[2,2,256,128], index: 7, kind: output, shape index: {0}]
  %s8 = inlined_call_operand.hbm [shape: bf16[2,2,256,128], index: 8, kind: output, shape index: {1}]
  %s9 = inlined_call_operand.hbm [shape: bf16[2,2,256,128], index: 9, kind: output, shape index: {2}]
  %10 = xla_tuple %s7, %s8, %s9
  %s11 = sld [smem:[#allocation0]]
  $region93: #{tpu_custom_call.1} parent=0
    _
  %s13 = ssub.s32 1, %s11
  %s14 = scalar_select 0, %s13, %s11
  $region1: #{tpu_custom_call.1} parent=0
    #allocation2 [shape = 'u8[524288]{0}', space=vmem, size = 0x80000, scoped, tag = 'input window, operand 0']
    #allocation3 [shape = 's32[2]{0}', space=sflag, size = 0x8, scoped, tag = 'scoped memory for tpu_custom_call.1']
    #allocation4 [shape = 's32[2]{0}', space=sflag, size = 0x8, scoped, tag = 'scoped memory for tpu_custom_call.1']
    #allocation5 [shape = 'u8[131072]{0}', space=vmem, size = 0x20000, scoped, tag = 'input window, operand 1, single buffered']
    #allocation6 [shape = 's32[1]{0}', space=sflag, size = 0x4, scoped, tag = 'scoped memory for tpu_custom_call.1']
    #allocation7 [shape = 'u8[131072]{0}', space=vmem, size = 0x20000, scoped, tag = 'input window, operand 2, single buffered']
    #allocation8 [shape = 'u8[131072]{0}', space=vmem, size = 0x20000, scoped, tag = 'input window, operand 3, single buffered']
    #allocation9 [shape = 's32[1]{0}', space=sflag, size = 0x4, scoped, tag = 'scoped memory for tpu_custom_call.1']
    #allocation10 [shape = 'u8[262144]{0}', space=vmem, size = 0x40000, scoped, tag = 'output window, operand 0']
    #allocation11 [shape = 'u8[262144]{0}', space=vmem, size = 0x40000, scoped, tag = 'output window, operand 1']
    #allocation12 [shape = 's32[2]{0}', space=sflag, size = 0x8, scoped, tag = 'scoped memory for tpu_custom_call.1']
    #allocation13 [shape = 'u8[262144]{0}', space=vmem, size = 0x40000, scoped, tag = 'output window, operand 2']
    %15 = vsyncpa [#allocation3], 0
    %s16 = scalar_lea.sflag [#allocation3], 1
    %17 = vsyncpa %s16, 0
    %18 = vsyncpa [#allocation6], 0
    %19 = vsyncpa [#allocation9], 0
    %20 = vsyncpa [#allocation4], 0
    %s21 = scalar_lea.sflag [#allocation4], 1
    %22 = vsyncpa %s21, 0
    %23 = vsyncpa [#allocation12], 0
    %s24 = scalar_lea.sflag [#allocation12], 1
    %25 = vsyncpa %s24, 0
    loop: start=0, step=1, limit=4
    $region2: #{tpu_custom_call.1} parent=1 // loop_pre_header
      _
    $region3: #{tpu_custom_call.1} parent=1 // loop_header
      %s27 = sphi 0, %s31
      %p28 = scmp.ge.s32.totalorder %s27, 4
      %s34 = sphi 0, %s46
      %s35 = sphi 0, %s42
      %s36 = sphi 0, %s34
      %s37 = sphi 0, %s35
      %s38 = sphi 0, %s36
      %s39 = sphi 0, %s37
      %s51 = sphi 0, %s53
      %s54 = sphi 0, %s51
      %s55 = sphi 0, %s54
      %s71 = sphi 0, %s55
      %s75 = sphi 0, %s75
      %s77 = sphi 0, %s75
      %s78 = sphi 0, %s77
      %s92 = sphi 0, %s78
      %s96 = sphi 0, %s96
      %s98 = sphi 0, %s96
      %s99 = sphi 0, %s98
      %s113 = sphi 0, %s99
      %s117 = sphi 0, %s117
      %s119 = sphi 0, %s117
      %s120 = sphi 0, %s119
      %s134 = sphi 0, %s120
      %s138 = sphi 0, %s138
      %s140 = sphi 0, %s138
      %s141 = sphi 0, %s140
      %s155 = sphi 0, %s141
      %s159 = sphi 0, %s159
      %s161 = sphi 0, %s159
      %s162 = sphi 0, %s161
      %s176 = sphi 0, %s162
      %s180 = sphi 0, %s180
      %s182 = sphi 0, %s180
      %s183 = sphi 0, %s182
      %s197 = sphi 0, %s183
      %s205 = sphi 0, %s207
      %s208 = sphi 0, %s205
      %s209 = sphi 0, %s208
      %s225 = sphi 0, %s209
      %s233 = sphi 0, %s235
      %s236 = sphi 0, %s233
      %s237 = sphi 0, %s236
      %s253 = sphi 0, %s237
      %s261 = sphi 0, %s263
      %s264 = sphi 0, %s261
      %s265 = sphi 0, %s264
      %s281 = sphi 0, %s265
    $region4: #{tpu_custom_call.1} parent=1 // loop_header_branch
      %30 = sbr.rel (%p28) target = $region8
    $region5: #{tpu_custom_call.1} parent=1 // loop_body
      %s32 = ssub.s32 %s27, 1
      %s33 = ssub.s32 %s27, 2
      %s40 = sadd.s32 1, %s35
      %p41 = scmp.ge.s32.totalorder %s40, 1
      %s42 = scalar_select %p41, 0, %s40
      %s43 = sadd.s32 1, %s34
      %s44 = scalar_select %p41, %s43, %s34
      %p45 = scmp.ge.s32.totalorder %s44, 2
      %s46 = scalar_select %p45, 0, %s44
      %s47 = ssub.s32 %s34, %s46
      %s48 = ssub.s32 %s35, %s42
      %s49 = sor.u32 %s47, %s48
      %p50 = scmp.eq.s32.totalorder %s49, 0
      %s52 = sadd.s32 %s51, 1
      %s53 = scalar_select %p50, %s51, %s52
      %p56 = pneg %p50
      %p57 = scmp.eq.s32.totalorder %s27, 1
      %p58 = por %p56, %p57
      %p59 = scmp.ne.s32.totalorder %s51, %s54
      %p60 = scmp.eq.s32.totalorder %s27, 0
      %p61 = por %p59, %p60
      %p62 = scmp.ne.s32.totalorder %s51, %s54
      %p63 = scmp.eq.s32.totalorder %s32, 1
      %p64 = por %p62, %p63
      %p65 = scmp.ne.s32.totalorder %s54, %s55
      %p66 = scmp.eq.s32.totalorder %s32, 0
      %p67 = por %p65, %p66
      %p68 = scmp.ne.s32.totalorder %s54, %s55
      %p69 = scmp.eq.s32.totalorder %s33, 1
      %p70 = por %p68, %p69
      %p72 = scmp.ne.s32.totalorder %s55, %s71
      %p73 = scmp.eq.s32.totalorder %s33, 0
      %p74 = por %p72, %p73
      %s76 = sadd.s32 %s75, 1
      %p79 = scmp.eq.s32.totalorder %s27, 1
      %p80 = scmp.ne.s32.totalorder %s75, %s77
      %p81 = scmp.eq.s32.totalorder %s27, 0
      %p82 = por %p80, %p81
      %p83 = scmp.ne.s32.totalorder %s75, %s77
      %p84 = scmp.eq.s32.totalorder %s32, 1
      %p85 = por %p83, %p84
      %p86 = scmp.ne.s32.totalorder %s77, %s78
      %p87 = scmp.eq.s32.totalorder %s32, 0
      %p88 = por %p86, %p87
      %p89 = scmp.ne.s32.totalorder %s77, %s78
      %p90 = scmp.eq.s32.totalorder %s33, 1
      %p91 = por %p89, %p90
      %p93 = scmp.ne.s32.totalorder %s78, %s92
      %p94 = scmp.eq.s32.totalorder %s33, 0
      %p95 = por %p93, %p94
      %s97 = sadd.s32 %s96, 1
      %p100 = scmp.eq.s32.totalorder %s27, 1
      %p101 = scmp.ne.s32.totalorder %s96, %s98
      %p102 = scmp.eq.s32.totalorder %s27, 0
      %p103 = por %p101, %p102
      %p104 = scmp.ne.s32.totalorder %s96, %s98
      %p105 = scmp.eq.s32.totalorder %s32, 1
      %p106 = por %p104, %p105
      %p107 = scmp.ne.s32.totalorder %s98, %s99
      %p108 = scmp.eq.s32.totalorder %s32, 0
      %p109 = por %p107, %p108
      %p110 = scmp.ne.s32.totalorder %s98, %s99
      %p111 = scmp.eq.s32.totalorder %s33, 1
      %p112 = por %p110, %p111
      %p114 = scmp.ne.s32.totalorder %s99, %s113
      %p115 = scmp.eq.s32.totalorder %s33, 0
      %p116 = por %p114, %p115
      %s118 = sadd.s32 %s117, 1
      %p121 = scmp.eq.s32.totalorder %s27, 1
      %p122 = scmp.ne.s32.totalorder %s117, %s119
      %p123 = scmp.eq.s32.totalorder %s27, 0
      %p124 = por %p122, %p123
      %p125 = scmp.ne.s32.totalorder %s117, %s119
      %p126 = scmp.eq.s32.totalorder %s32, 1
      %p127 = por %p125, %p126
      %p128 = scmp.ne.s32.totalorder %s119, %s120
      %p129 = scmp.eq.s32.totalorder %s32, 0
      %p130 = por %p128, %p129
      %p131 = scmp.ne.s32.totalorder %s119, %s120
      %p132 = scmp.eq.s32.totalorder %s33, 1
      %p133 = por %p131, %p132
      %p135 = scmp.ne.s32.totalorder %s120, %s134
      %p136 = scmp.eq.s32.totalorder %s33, 0
      %p137 = por %p135, %p136
      %s139 = sadd.s32 %s138, 1
      %p142 = scmp.eq.s32.totalorder %s27, 1
      %p143 = scmp.ne.s32.totalorder %s138, %s140
      %p144 = scmp.eq.s32.totalorder %s27, 0
      %p145 = por %p143, %p144
      %p146 = scmp.ne.s32.totalorder %s138, %s140
      %p147 = scmp.eq.s32.totalorder %s32, 1
      %p148 = por %p146, %p147
      %p149 = scmp.ne.s32.totalorder %s140, %s141
      %p150 = scmp.eq.s32.totalorder %s32, 0
      %p151 = por %p149, %p150
      %p152 = scmp.ne.s32.totalorder %s140, %s141
      %p153 = scmp.eq.s32.totalorder %s33, 1
      %p154 = por %p152, %p153
      %p156 = scmp.ne.s32.totalorder %s141, %s155
      %p157 = scmp.eq.s32.totalorder %s33, 0
      %p158 = por %p156, %p157
      %s160 = sadd.s32 %s159, 1
      %p163 = scmp.eq.s32.totalorder %s27, 1
      %p164 = scmp.ne.s32.totalorder %s159, %s161
      %p165 = scmp.eq.s32.totalorder %s27, 0
      %p166 = por %p164, %p165
      %p167 = scmp.ne.s32.totalorder %s159, %s161
      %p168 = scmp.eq.s32.totalorder %s32, 1
      %p169 = por %p167, %p168
      %p170 = scmp.ne.s32.totalorder %s161, %s162
      %p171 = scmp.eq.s32.totalorder %s32, 0
      %p172 = por %p170, %p171
      %p173 = scmp.ne.s32.totalorder %s161, %s162
      %p174 = scmp.eq.s32.totalorder %s33, 1
      %p175 = por %p173, %p174
      %p177 = scmp.ne.s32.totalorder %s162, %s176
      %p178 = scmp.eq.s32.totalorder %s33, 0
      %p179 = por %p177, %p178
      %s181 = sadd.s32 %s180, 1
      %p184 = scmp.eq.s32.totalorder %s27, 1
      %p185 = scmp.ne.s32.totalorder %s180, %s182
      %p186 = scmp.eq.s32.totalorder %s27, 0
      %p187 = por %p185, %p186
      %p188 = scmp.ne.s32.totalorder %s180, %s182
      %p189 = scmp.eq.s32.totalorder %s32, 1
      %p190 = por %p188, %p189
      %p191 = scmp.ne.s32.totalorder %s182, %s183
      %p192 = scmp.eq.s32.totalorder %s32, 0
      %p193 = por %p191, %p192
      %p194 = scmp.ne.s32.totalorder %s182, %s183
      %p195 = scmp.eq.s32.totalorder %s33, 1
      %p196 = por %p194, %p195
      %p198 = scmp.ne.s32.totalorder %s183, %s197
      %p199 = scmp.eq.s32.totalorder %s33, 0
      %p200 = por %p198, %p199
      %s201 = ssub.s32 %s34, %s46
      %s202 = ssub.s32 %s35, %s42
      %s203 = sor.u32 %s201, %s202
      %p204 = scmp.eq.s32.totalorder %s203, 0
      %s206 = sadd.s32 %s205, 1
      %s207 = scalar_select %p204, %s205, %s206
      %p210 = pneg %p204
      %p211 = scmp.eq.s32.totalorder %s27, 1
      %p212 = por %p210, %p211
      %p213 = scmp.ne.s32.totalorder %s205, %s208
      %p214 = scmp.eq.s32.totalorder %s27, 0
      %p215 = por %p213, %p214
      %p216 = scmp.ne.s32.totalorder %s205, %s208
      %p217 = scmp.eq.s32.totalorder %s32, 1
      %p218 = por %p216, %p217
      %p219 = scmp.ne.s32.totalorder %s208, %s209
      %p220 = scmp.eq.s32.totalorder %s32, 0
      %p221 = por %p219, %p220
      %p222 = scmp.ne.s32.totalorder %s208, %s209
      %p223 = scmp.eq.s32.totalorder %s33, 1
      %p224 = por %p222, %p223
      %p226 = scmp.ne.s32.totalorder %s209, %s225
      %p227 = scmp.eq.s32.totalorder %s33, 0
      %p228 = por %p226, %p227
      %s229 = ssub.s32 %s34, %s46
      %s230 = ssub.s32 %s35, %s42
      %s231 = sor.u32 %s229, %s230
      %p232 = scmp.eq.s32.totalorder %s231, 0
      %s234 = sadd.s32 %s233, 1
      %s235 = scalar_select %p232, %s233, %s234
      %p238 = pneg %p232
      %p239 = scmp.eq.s32.totalorder %s27, 1
      %p240 = por %p238, %p239
      %p241 = scmp.ne.s32.totalorder %s233, %s236
      %p242 = scmp.eq.s32.totalorder %s27, 0
      %p243 = por %p241, %p242
      %p244 = scmp.ne.s32.totalorder %s233, %s236
      %p245 = scmp.eq.s32.totalorder %s32, 1
      %p246 = por %p244, %p245
      %p247 = scmp.ne.s32.totalorder %s236, %s237
      %p248 = scmp.eq.s32.totalorder %s32, 0
      %p249 = por %p247, %p248
      %p250 = scmp.ne.s32.totalorder %s236, %s237
      %p251 = scmp.eq.s32.totalorder %s33, 1
      %p252 = por %p250, %p251
      %p254 = scmp.ne.s32.totalorder %s237, %s253
      %p255 = scmp.eq.s32.totalorder %s33, 0
      %p256 = por %p254, %p255
      %s257 = ssub.s32 %s34, %s46
      %s258 = ssub.s32 %s35, %s42
      %s259 = sor.u32 %s257, %s258
      %p260 = scmp.eq.s32.totalorder %s259, 0
      %s262 = sadd.s32 %s261, 1
      %s263 = scalar_select %p260, %s261, %s262
      %p266 = pneg %p260
      %p267 = scmp.eq.s32.totalorder %s27, 1
      %p268 = por %p266, %p267
      %p269 = scmp.ne.s32.totalorder %s261, %s264
      %p270 = scmp.eq.s32.totalorder %s27, 0
      %p271 = por %p269, %p270
      %p272 = scmp.ne.s32.totalorder %s261, %s264
      %p273 = scmp.eq.s32.totalorder %s32, 1
      %p274 = por %p272, %p273
      %p275 = scmp.ne.s32.totalorder %s264, %s265
      %p276 = scmp.eq.s32.totalorder %s32, 0
      %p277 = por %p275, %p276
      %p278 = scmp.ne.s32.totalorder %s264, %s265
      %p279 = scmp.eq.s32.totalorder %s33, 1
      %p280 = por %p278, %p279
      %p282 = scmp.ne.s32.totalorder %s265, %s281
      %p283 = scmp.eq.s32.totalorder %s33, 0
      %p284 = por %p282, %p283
      %p285 = scmp.le.s32.totalorder 1, %s27
      %p286 = scmp.lt.s32.totalorder %s27, 3
      %p287 = pnand %p285, %p286
      %p288 = pneg %p287
      // Predicated region
      $region9: #{tpu_custom_call.1} parent=5 // pred_check
        _
      $region10: #{tpu_custom_call.1} parent=5 // pred_check_branch
        %290 = sbr.rel (%p287) target = $region12
      $region11: #{tpu_custom_call.1} parent=5 // pred_region
        %s291 = ssub.s32 %s27, 1
        // Predicated region
        $region13: #{tpu_custom_call.1} parent=11 // pred_check
          %p292 = pneg %p88
        $region14: #{tpu_custom_call.1} parent=11 // pred_check_branch
          %294 = sbr.rel (%p292) target = $region16
        $region15: #{tpu_custom_call.1} parent=11 // pred_region
          %s296 = ssub.s32 4096, 4096
          %297 = vsyncadd [#allocation6], %s296
          %s298 = sshll.u32 [#allocation5], 4
          %s299 = int_to_ptr.vmem [resolvable:$true] %s298
          %304 = dma.hbm_to_vmem [thread:$0]  %s1, 4096, %s299, [#allocation6], 128, 128, 8
        $region16: #{tpu_custom_call.1} parent=11 // pred_fallthru
          _
        // Predicated region
        $region17: #{tpu_custom_call.1} parent=11 // pred_check
          %p305 = pneg %p109
        $region18: #{tpu_custom_call.1} parent=11 // pred_check_branch
          %307 = sbr.rel (%p305) target = $region20
        $region19: #{tpu_custom_call.1} parent=11 // pred_region
          %s309 = ssub.s32 4096, 4096
          %310 = vsyncadd [#allocation6], %s309
          %s311 = sshll.u32 [#allocation7], 4
          %s312 = int_to_ptr.vmem [resolvable:$true] %s311
          %317 = dma.hbm_to_vmem [thread:$0]  %s2, 4096, %s312, [#allocation6], 128, 128, 8
        $region20: #{tpu_custom_call.1} parent=11 // pred_fallthru
          _
        // Predicated region
        $region21: #{tpu_custom_call.1} parent=11 // pred_check
          %p318 = pneg %p130
        $region22: #{tpu_custom_call.1} parent=11 // pred_check_branch
          %320 = sbr.rel (%p318) target = $region24
        $region23: #{tpu_custom_call.1} parent=11 // pred_region
          %s322 = ssub.s32 4096, 4096
          %323 = vsyncadd [#allocation9], %s322
          %s324 = sshll.u32 [#allocation8], 4
          %s325 = int_to_ptr.vmem [resolvable:$true] %s324
          %330 = dma.hbm_to_vmem [thread:$0]  %s3, 4096, %s325, [#allocation9], 128, 128, 8
        $region24: #{tpu_custom_call.1} parent=11 // pred_fallthru
          _
        // Predicated region
        $region25: #{tpu_custom_call.1} parent=11 // pred_check
          %p331 = pneg %p151
        $region26: #{tpu_custom_call.1} parent=11 // pred_check_branch
          %333 = sbr.rel (%p331) target = $region28
        $region27: #{tpu_custom_call.1} parent=11 // pred_region
          _
        $region28: #{tpu_custom_call.1} parent=11 // pred_fallthru
          _
        // Predicated region
        $region29: #{tpu_custom_call.1} parent=11 // pred_check
          %p334 = pneg %p172
        $region30: #{tpu_custom_call.1} parent=11 // pred_check_branch
          %336 = sbr.rel (%p334) target = $region32
        $region31: #{tpu_custom_call.1} parent=11 // pred_region
          _
        $region32: #{tpu_custom_call.1} parent=11 // pred_fallthru
          _
        // Predicated region
        $region33: #{tpu_custom_call.1} parent=11 // pred_check
          %p337 = pneg %p193
        $region34: #{tpu_custom_call.1} parent=11 // pred_check_branch
          %339 = sbr.rel (%p337) target = $region36
        $region35: #{tpu_custom_call.1} parent=11 // pred_region
          _
        $region36: #{tpu_custom_call.1} parent=11 // pred_fallthru
          _
      $region12: #{tpu_custom_call.1} parent=5 // pred_fallthru
        _
      %p340 = scmp.lt.s32.totalorder %s27, 2
      // Predicated region
      $region37: #{tpu_custom_call.1} parent=5 // pred_check
        %p341 = pneg %p340
      $region38: #{tpu_custom_call.1} parent=5 // pred_check_branch
        %343 = sbr.rel (%p341) target = $region40
      $region39: #{tpu_custom_call.1} parent=5 // pred_region
        // Predicated region
        $region41: #{tpu_custom_call.1} parent=39 // pred_check
          %p344 = pneg %p61
        $region42: #{tpu_custom_call.1} parent=39 // pred_check_branch
          %346 = sbr.rel (%p344) target = $region44
        $region43: #{tpu_custom_call.1} parent=39 // pred_region
          %s347 = sand.u32 %s51, 1
          %s348 = scalar_lea.sflag [#allocation3], %s347
          %s349 = sand.u32 %s51, 1
          %s350 = smul.addr %s349, 512
          %s351 = scalar_lea.vmem [#allocation2], %s350
          %s352 = smul.u32 32, %s35
          %s354 = ssub.s32 8192, 8192
          %355 = vsyncadd %s348, %s354
          %s356 = smul.addr %s352, 2
          %s357 = smul.addr %s34, 64
          %s358 = sadd.s32 %s356, %s357
          %s359 = smul.addr %s358, 128
          %s360 = scalar_lea.hbm %s0, %s359
          %s361 = sshll.u32 %s351, 4
          %s362 = int_to_ptr.vmem [resolvable:$true] %s361
          %367 = dma.hbm_to_vmem [thread:$0]  %s360, 8192, %s362, %s348, 256, 256, 16
        $region44: #{tpu_custom_call.1} parent=39 // pred_fallthru
          _
      $region40: #{tpu_custom_call.1} parent=5 // pred_fallthru
        _
      %p368 = scmp.le.s32.totalorder 1, %s27
      %p369 = scmp.lt.s32.totalorder %s27, 3
      %p370 = pnand %p368, %p369
      %p371 = pneg %p370
      // Predicated region
      $region45: #{tpu_custom_call.1} parent=5 // pred_check
        _
      $region46: #{tpu_custom_call.1} parent=5 // pred_check_branch
        %373 = sbr.rel (%p370) target = $region48
      $region47: #{tpu_custom_call.1} parent=5 // pred_region
        %s374 = ssub.s32 %s27, 1
        %s375 = sand.u32 %s54, 1
        %s376 = scalar_lea.sflag [#allocation3], %s375
        %s377 = sand.u32 %s54, 1
        %s378 = smul.addr %s377, 512
        %s379 = scalar_lea.vmem [#allocation2], %s378
        // Predicated region
        $region49: #{tpu_custom_call.1} parent=47 // pred_check
          %p380 = pneg %p67
        $region50: #{tpu_custom_call.1} parent=47 // pred_check_branch
          %382 = sbr.rel (%p380) target = $region52
        $region51: #{tpu_custom_call.1} parent=47 // pred_region
          %383 = dma.done %s376, 8192
        $region52: #{tpu_custom_call.1} parent=47 // pred_fallthru
          _
        // Predicated region
        $region53: #{tpu_custom_call.1} parent=47 // pred_check
          %p384 = pneg %p88
        $region54: #{tpu_custom_call.1} parent=47 // pred_check_branch
          %386 = sbr.rel (%p384) target = $region56
        $region55: #{tpu_custom_call.1} parent=47 // pred_region
          %387 = dma.done [#allocation6], 4096
        $region56: #{tpu_custom_call.1} parent=47 // pred_fallthru
          _
        // Predicated region
        $region57: #{tpu_custom_call.1} parent=47 // pred_check
          %p388 = pneg %p109
        $region58: #{tpu_custom_call.1} parent=47 // pred_check_branch
          %390 = sbr.rel (%p388) target = $region60
        $region59: #{tpu_custom_call.1} parent=47 // pred_region
          %391 = dma.done [#allocation6], 4096
        $region60: #{tpu_custom_call.1} parent=47 // pred_fallthru
          _
        // Predicated region
        $region61: #{tpu_custom_call.1} parent=47 // pred_check
          %p392 = pneg %p130
        $region62: #{tpu_custom_call.1} parent=47 // pred_check_branch
          %394 = sbr.rel (%p392) target = $region64
        $region63: #{tpu_custom_call.1} parent=47 // pred_region
          %395 = dma.done [#allocation9], 4096
        $region64: #{tpu_custom_call.1} parent=47 // pred_fallthru
          _
        %s396 = sand.u32 %s54, 1
        %s397 = scalar_lea.sflag [#allocation3], %s396
        %s398 = sand.u32 %s54, 1
        %s399 = smul.addr %s398, 512
        %s400 = scalar_lea.vmem [#allocation2], %s399
        %p401 = pneg %p67
        %p402 = pneg %p64
        %p403 = pneg %p88
        %p404 = pneg %p85
        %p405 = pneg %p109
        %p406 = pneg %p106
        %p407 = pneg %p130
        %p408 = pneg %p127
        %p409 = pneg %p151
        %p410 = pneg %p148
        %p411 = pneg %p172
        %p412 = pneg %p169
        %p413 = pneg %p193
        %p414 = pneg %p190
        %p415 = pneg %p221
        %p416 = pneg %p218
        %s417 = sand.u32 %s208, 1
        %s418 = scalar_lea.sflag [#allocation4], %s417
        %s419 = sand.u32 %s208, 1
        %s420 = smul.addr %s419, 256
        %s421 = scalar_lea.vmem [#allocation10], %s420
        %p422 = pneg %p249
        %p423 = pneg %p246
        %s424 = sand.u32 %s32, 1
        %s425 = scalar_lea.sflag [#allocation12], %s424
        %s426 = sand.u32 %s236, 1
        %s427 = smul.addr %s426, 256
        %s428 = scalar_lea.vmem [#allocation11], %s427
        %p429 = pneg %p277
        %p430 = pneg %p274
        %s431 = sand.u32 %s32, 1
        %s432 = scalar_lea.sflag [#allocation12], %s431
        %s433 = sand.u32 %s264, 1
        %s434 = smul.addr %s433, 256
        %s435 = scalar_lea.vmem [#allocation13], %s434
        %s436 = smul.u32 32, %s37
        %s437 = smul.u32 32, %s37
        %s438 = smul.u32 32, %s37
        %s439 = smul.u32 32, %s37
        %v440 = vld [vmem:[%s379] sm:$0xff]
        %v441 = vld [vmem:[%s379 + $0x8] sm:$0xff]
        %v442 = vld [vmem:[%s379 + $0x10] sm:$0xff]
        %v443 = vld [vmem:[%s379 + $0x18] sm:$0xff]
        %v444 = vld [vmem:[%s379 + $0x20] sm:$0xff]
        %v445 = vld [vmem:[%s379 + $0x28] sm:$0xff]
        %v446 = vld [vmem:[%s379 + $0x30] sm:$0xff]
        %v447 = vld [vmem:[%s379 + $0x38] sm:$0xff]
        %v448 = vld [vmem:[%s379 + $0x40] sm:$0xff]
        %v449 = vld [vmem:[%s379 + $0x48] sm:$0xff]
        %v450 = vld [vmem:[%s379 + $0x50] sm:$0xff]
        %v451 = vld [vmem:[%s379 + $0x58] sm:$0xff]
        %v452 = vld [vmem:[%s379 + $0x60] sm:$0xff]
        %v453 = vld [vmem:[%s379 + $0x68] sm:$0xff]
        %v454 = vld [vmem:[%s379 + $0x70] sm:$0xff]
        %v455 = vld [vmem:[%s379 + $0x78] sm:$0xff]
        %v456 = vld [vmem:[%s379 + $0x80] sm:$0xff]
        %v457 = vld [vmem:[%s379 + $0x88] sm:$0xff]
        %v458 = vld [vmem:[%s379 + $0x90] sm:$0xff]
        %v459 = vld [vmem:[%s379 + $0x98] sm:$0xff]
        %v460 = vld [vmem:[%s379 + $0xa0] sm:$0xff]
        %v461 = vld [vmem:[%s379 + $0xa8] sm:$0xff]
        %v462 = vld [vmem:[%s379 + $0xb0] sm:$0xff]
        %v463 = vld [vmem:[%s379 + $0xb8] sm:$0xff]
        %v464 = vld [vmem:[%s379 + $0xc0] sm:$0xff]
        %v465 = vld [vmem:[%s379 + $0xc8] sm:$0xff]
        %v466 = vld [vmem:[%s379 + $0xd0] sm:$0xff]
        %v467 = vld [vmem:[%s379 + $0xd8] sm:$0xff]
        %v468 = vld [vmem:[%s379 + $0xe0] sm:$0xff]
        %v469 = vld [vmem:[%s379 + $0xe8] sm:$0xff]
        %v470 = vld [vmem:[%s379 + $0xf0] sm:$0xff]
        %v471 = vld [vmem:[%s379 + $0xf8] sm:$0xff]
        %v472 = vld [vmem:[%s379 + $0x100] sm:$0xff]
        %v473 = vld [vmem:[%s379 + $0x108] sm:$0xff]
        %v474 = vld [vmem:[%s379 + $0x110] sm:$0xff]
        %v475 = vld [vmem:[%s379 + $0x118] sm:$0xff]
        %v476 = vld [vmem:[%s379 + $0x120] sm:$0xff]
        %v477 = vld [vmem:[%s379 + $0x128] sm:$0xff]
        %v478 = vld [vmem:[%s379 + $0x130] sm:$0xff]
        %v479 = vld [vmem:[%s379 + $0x138] sm:$0xff]
        %v480 = vld [vmem:[%s379 + $0x140] sm:$0xff]
        %v481 = vld [vmem:[%s379 + $0x148] sm:$0xff]
        %v482 = vld [vmem:[%s379 + $0x150] sm:$0xff]
        %v483 = vld [vmem:[%s379 + $0x158] sm:$0xff]
        %v484 = vld [vmem:[%s379 + $0x160] sm:$0xff]
        %v485 = vld [vmem:[%s379 + $0x168] sm:$0xff]
        %v486 = vld [vmem:[%s379 + $0x170] sm:$0xff]
        %v487 = vld [vmem:[%s379 + $0x178] sm:$0xff]
        %v488 = vld [vmem:[%s379 + $0x180] sm:$0xff]
        %v489 = vld [vmem:[%s379 + $0x188] sm:$0xff]
        %v490 = vld [vmem:[%s379 + $0x190] sm:$0xff]
        %v491 = vld [vmem:[%s379 + $0x198] sm:$0xff]
        %v492 = vld [vmem:[%s379 + $0x1a0] sm:$0xff]
        %v493 = vld [vmem:[%s379 + $0x1a8] sm:$0xff]
        %v494 = vld [vmem:[%s379 + $0x1b0] sm:$0xff]
        %v495 = vld [vmem:[%s379 + $0x1b8] sm:$0xff]
        %v496 = vld [vmem:[%s379 + $0x1c0] sm:$0xff]
        %v497 = vld [vmem:[%s379 + $0x1c8] sm:$0xff]
        %v498 = vld [vmem:[%s379 + $0x1d0] sm:$0xff]
        %v499 = vld [vmem:[%s379 + $0x1d8] sm:$0xff]
        %v500 = vld [vmem:[%s379 + $0x1e0] sm:$0xff]
        %v501 = vld [vmem:[%s379 + $0x1e8] sm:$0xff]
        %v502 = vld [vmem:[%s379 + $0x1f0] sm:$0xff]
        %v503 = vld [vmem:[%s379 + $0x1f8] sm:$0xff]
        %v504 = vpack.c.bf16 %v442, %v440
        %v505 = vpack.c.bf16 %v443, %v441
        %v506 = vpack.c.bf16 %v446, %v444
        %v507 = vpack.c.bf16 %v447, %v445
        %v508 = vpack.c.bf16 %v450, %v448
        %v509 = vpack.c.bf16 %v451, %v449
        %v510 = vpack.c.bf16 %v454, %v452
        %v511 = vpack.c.bf16 %v455, %v453
        %v512 = vpack.c.bf16 %v458, %v456
        %v513 = vpack.c.bf16 %v459, %v457
        %v514 = vpack.c.bf16 %v462, %v460
        %v515 = vpack.c.bf16 %v463, %v461
        %v516 = vpack.c.bf16 %v466, %v464
        %v517 = vpack.c.bf16 %v467, %v465
        %v518 = vpack.c.bf16 %v470, %v468
        %v519 = vpack.c.bf16 %v471, %v469
        %v520 = vpack.c.bf16 %v474, %v472
        %v521 = vpack.c.bf16 %v475, %v473
        %v522 = vpack.c.bf16 %v478, %v476
        %v523 = vpack.c.bf16 %v479, %v477
        %v524 = vpack.c.bf16 %v482, %v480
        %v525 = vpack.c.bf16 %v483, %v481
        %v526 = vpack.c.bf16 %v486, %v484
        %v527 = vpack.c.bf16 %v487, %v485
        %v528 = vpack.c.bf16 %v490, %v488
        %v529 = vpack.c.bf16 %v491, %v489
        %v530 = vpack.c.bf16 %v494, %v492
        %v531 = vpack.c.bf16 %v495, %v493
        %v532 = vpack.c.bf16 %v498, %v496
        %v533 = vpack.c.bf16 %v499, %v497
        %v534 = vpack.c.bf16 %v502, %v500
        %v535 = vpack.c.bf16 %v503, %v501
        %v536 = vld [vmem:[#allocation5] sm:$0xff]
        %v537 = vld [vmem:[#allocation5 + $0x8] sm:$0xff]
        %v538 = vld [vmem:[#allocation5 + $0x10] sm:$0xff]
        %v539 = vld [vmem:[#allocation5 + $0x18] sm:$0xff]
        %v540 = vld [vmem:[#allocation5 + $0x20] sm:$0xff]
        %v541 = vld [vmem:[#allocation5 + $0x28] sm:$0xff]
        %v542 = vld [vmem:[#allocation5 + $0x30] sm:$0xff]
        %v543 = vld [vmem:[#allocation5 + $0x38] sm:$0xff]
        %v544 = vld [vmem:[#allocation5 + $0x40] sm:$0xff]
        %v545 = vld [vmem:[#allocation5 + $0x48] sm:$0xff]
        %v546 = vld [vmem:[#allocation5 + $0x50] sm:$0xff]
        %v547 = vld [vmem:[#allocation5 + $0x58] sm:$0xff]
        %v548 = vld [vmem:[#allocation5 + $0x60] sm:$0xff]
        %v549 = vld [vmem:[#allocation5 + $0x68] sm:$0xff]
        %v550 = vld [vmem:[#allocation5 + $0x70] sm:$0xff]
        %v551 = vld [vmem:[#allocation5 + $0x78] sm:$0xff]
        %v552 = vld [vmem:[#allocation5 + $0x80] sm:$0xff]
        %v553 = vld [vmem:[#allocation5 + $0x88] sm:$0xff]
        %v554 = vld [vmem:[#allocation5 + $0x90] sm:$0xff]
        %v555 = vld [vmem:[#allocation5 + $0x98] sm:$0xff]
        %v556 = vld [vmem:[#allocation5 + $0xa0] sm:$0xff]
        %v557 = vld [vmem:[#allocation5 + $0xa8] sm:$0xff]
        %v558 = vld [vmem:[#allocation5 + $0xb0] sm:$0xff]
        %v559 = vld [vmem:[#allocation5 + $0xb8] sm:$0xff]
        %v560 = vld [vmem:[#allocation5 + $0xc0] sm:$0xff]
        %v561 = vld [vmem:[#allocation5 + $0xc8] sm:$0xff]
        %v562 = vld [vmem:[#allocation5 + $0xd0] sm:$0xff]
        %v563 = vld [vmem:[#allocation5 + $0xd8] sm:$0xff]
        %v564 = vld [vmem:[#allocation5 + $0xe0] sm:$0xff]
        %v565 = vld [vmem:[#allocation5 + $0xe8] sm:$0xff]
        %v566 = vld [vmem:[#allocation5 + $0xf0] sm:$0xff]
        %v567 = vld [vmem:[#allocation5 + $0xf8] sm:$0xff]
        %v568 = vld [vmem:[%s4] sm:$0x3]
        %v570 = vlaneseq
        %v571 = vshrl.u32 %v570, 7
        %v572 = vsub.s32 0, %v571
        %v573 = vrot.slane %v568, %v572
        %v574 = vlaneseq
        %v575 = vshrl.u32 %v574, 7
        %v576 = vsub.s32 1, %v575
        %v577 = vrot.slane %v568, %v576
        %v612 = vunpack.c.l.b16 %v536
        %v613 = vunpack.c.h.b16 %v536
        %v614 = vunpack.c.l.b16 %v537
        %v615 = vunpack.c.h.b16 %v537
        %v616 = vunpack.c.l.b16 %v538
        %v617 = vunpack.c.h.b16 %v538
        %v618 = vunpack.c.l.b16 %v539
        %v619 = vunpack.c.h.b16 %v539
        %v620 = vunpack.c.l.b16 %v540
        %v621 = vunpack.c.h.b16 %v540
        %v622 = vunpack.c.l.b16 %v541
        %v623 = vunpack.c.h.b16 %v541
        %v624 = vunpack.c.l.b16 %v542
        %v625 = vunpack.c.h.b16 %v542
        %v626 = vunpack.c.l.b16 %v543
        %v627 = vunpack.c.h.b16 %v543
        %v628 = vunpack.c.l.b16 %v544
        %v629 = vunpack.c.h.b16 %v544
        %v630 = vunpack.c.l.b16 %v545
        %v631 = vunpack.c.h.b16 %v545
        %v632 = vunpack.c.l.b16 %v546
        %v633 = vunpack.c.h.b16 %v546
        %v634 = vunpack.c.l.b16 %v547
        %v635 = vunpack.c.h.b16 %v547
        %v636 = vunpack.c.l.b16 %v548
        %v637 = vunpack.c.h.b16 %v548
        %v638 = vunpack.c.l.b16 %v549
        %v639 = vunpack.c.h.b16 %v549
        %v640 = vunpack.c.l.b16 %v550
        %v641 = vunpack.c.h.b16 %v550
        %v642 = vunpack.c.l.b16 %v551
        %v643 = vunpack.c.h.b16 %v551
        %v644 = vunpack.c.l.b16 %v552
        %v645 = vunpack.c.h.b16 %v552
        %v646 = vunpack.c.l.b16 %v553
        %v647 = vunpack.c.h.b16 %v553
        %v648 = vunpack.c.l.b16 %v554
        %v649 = vunpack.c.h.b16 %v554
        %v650 = vunpack.c.l.b16 %v555
        %v651 = vunpack.c.h.b16 %v555
        %v652 = vunpack.c.l.b16 %v556
        %v653 = vunpack.c.h.b16 %v556
        %v654 = vunpack.c.l.b16 %v557
        %v655 = vunpack.c.h.b16 %v557
        %v656 = vunpack.c.l.b16 %v558
        %v657 = vunpack.c.h.b16 %v558
        %v658 = vunpack.c.l.b16 %v559
        %v659 = vunpack.c.h.b16 %v559
        %v660 = vunpack.c.l.b16 %v560
        %v661 = vunpack.c.h.b16 %v560
        %v662 = vunpack.c.l.b16 %v561
        %v663 = vunpack.c.h.b16 %v561
        %v664 = vunpack.c.l.b16 %v562
        %v665 = vunpack.c.h.b16 %v562
        %v666 = vunpack.c.l.b16 %v563
        %v667 = vunpack.c.h.b16 %v563
        %v668 = vunpack.c.l.b16 %v564
        %v669 = vunpack.c.h.b16 %v564
        %v670 = vunpack.c.l.b16 %v565
        %v671 = vunpack.c.h.b16 %v565
        %v672 = vunpack.c.l.b16 %v566
        %v673 = vunpack.c.h.b16 %v566
        %v674 = vunpack.c.l.b16 %v567
        %v675 = vunpack.c.h.b16 %v567
        %v676 = vpack.c.b16 %v614, %v612
        %v677 = vpack.c.b16 %v615, %v613
        %v678 = vpack.c.b16 %v618, %v616
        %v679 = vpack.c.b16 %v619, %v617
        %v680 = vpack.c.b16 %v622, %v620
        %v681 = vpack.c.b16 %v623, %v621
        %v682 = vpack.c.b16 %v626, %v624
        %v683 = vpack.c.b16 %v627, %v625
        %v684 = vpack.c.b16 %v630, %v628
        %v685 = vpack.c.b16 %v631, %v629
        %v686 = vpack.c.b16 %v634, %v632
        %v687 = vpack.c.b16 %v635, %v633
        %v688 = vpack.c.b16 %v638, %v636
        %v689 = vpack.c.b16 %v639, %v637
        %v690 = vpack.c.b16 %v642, %v640
        %v691 = vpack.c.b16 %v643, %v641
        %v692 = vpack.c.b16 %v646, %v644
        %v693 = vpack.c.b16 %v647, %v645
        %v694 = vpack.c.b16 %v650, %v648
        %v695 = vpack.c.b16 %v651, %v649
        %v696 = vpack.c.b16 %v654, %v652
        %v697 = vpack.c.b16 %v655, %v653
        %v698 = vpack.c.b16 %v658, %v656
        %v699 = vpack.c.b16 %v659, %v657
        %v700 = vpack.c.b16 %v662, %v660
        %v701 = vpack.c.b16 %v663, %v661
        %v702 = vpack.c.b16 %v666, %v664
        %v703 = vpack.c.b16 %v667, %v665
        %v704 = vpack.c.b16 %v670, %v668
        %v705 = vpack.c.b16 %v671, %v669
        %v706 = vpack.c.b16 %v674, %v672
        %v707 = vpack.c.b16 %v675, %v673
        %740 = vmatprep.subr.bf16.mxu0 %v677
        %741 = vmatpush1.bf16.msra.mxu0 %v676
        %742 = vmatprep.subr.bf16.mxu0 %v679
        %743 = vmatpush1.bf16.msra.mxu0 %v678
        %744 = vmatprep.subr.bf16.mxu0 %v681
        %745 = vmatpush1.bf16.msra.mxu0 %v680
        %746 = vmatprep.subr.bf16.mxu0 %v683
        %747 = vmatpush1.bf16.msra.mxu0 %v682
        %748 = vmatprep.subr.bf16.mxu0 %v685
        %749 = vmatpush1.bf16.msra.mxu0 %v684
        %750 = vmatprep.subr.bf16.mxu0 %v687
        %751 = vmatpush1.bf16.msra.mxu0 %v686
        %752 = vmatprep.subr.bf16.mxu0 %v689
        %753 = vmatpush1.bf16.msra.mxu0 %v688
        %754 = vmatprep.subr.bf16.mxu0 %v691
        %755 = vmatpush1.bf16.msra.mxu0 %v690
        %756 = vmatprep.subr.bf16.mxu0 %v693
        %757 = vmatpush1.bf16.msra.mxu0 %v692
        %758 = vmatprep.subr.bf16.mxu0 %v695
        %759 = vmatpush1.bf16.msra.mxu0 %v694
        %760 = vmatprep.subr.bf16.mxu0 %v697
        %761 = vmatpush1.bf16.msra.mxu0 %v696
        %762 = vmatprep.subr.bf16.mxu0 %v699
        %763 = vmatpush1.bf16.msra.mxu0 %v698
        %764 = vmatprep.subr.bf16.mxu0 %v701
        %765 = vmatpush1.bf16.msra.mxu0 %v700
        %766 = vmatprep.subr.bf16.mxu0 %v703
        %767 = vmatpush1.bf16.msra.mxu0 %v702
        %768 = vmatprep.subr.bf16.mxu0 %v705
        %769 = vmatpush1.bf16.msra.mxu0 %v704
        %770 = vmatprep.subr.bf16.mxu0 %v707
        %771 = vmatpush1.bf16.msra.mxu0 %v706
        %772 = vmatprep.mubr.bf16.mxu0 %v505
        %773 = vmatmul.mubr.bf16.gmra.mrb[0].mxu0 %v504
        %v774 = vpop.f32.mrb[0].mxu0
        %v775 = vadd.f32 %v573, %v774
        %v776 = vpop.f32.mrb[0].mxu0
        %v777 = vadd.f32 %v577, %v776
        %v778 = vpop.f32.mrb[0].mxu0
        %v779 = vadd.f32 %v573, %v778
        %v780 = vpop.f32.mrb[0].mxu0
        %v781 = vadd.f32 %v577, %v780
        %782 = vmatprep.mubr.bf16.mxu0 %v507
        %783 = vmatmul.mubr.bf16.gmra.mrb[0].mxu0 %v506
        %v784 = vpop.f32.mrb[0].mxu0
        %v785 = vadd.f32 %v573, %v784
        %v786 = vpop.f32.mrb[0].mxu0
        %v787 = vadd.f32 %v577, %v786
        %v788 = vpop.f32.mrb[0].mxu0
        %v789 = vadd.f32 %v573, %v788
        %v790 = vpop.f32.mrb[0].mxu0
        %v791 = vadd.f32 %v577, %v790
        %792 = vmatprep.mubr.bf16.mxu0 %v509
        %793 = vmatmul.mubr.bf16.gmra.mrb[0].mxu0 %v508
        %v794 = vpop.f32.mrb[0].mxu0
        %v795 = vadd.f32 %v573, %v794
        %v796 = vpop.f32.mrb[0].mxu0
        %v797 = vadd.f32 %v577, %v796
        %v798 = vpop.f32.mrb[0].mxu0
        %v799 = vadd.f32 %v573, %v798
        %v800 = vpop.f32.mrb[0].mxu0
        %v801 = vadd.f32 %v577, %v800
        %802 = vmatprep.mubr.bf16.mxu0 %v511
        %803 = vmatmul.mubr.bf16.gmra.mrb[0].mxu0 %v510
        %v804 = vpop.f32.mrb[0].mxu0
        %v805 = vadd.f32 %v573, %v804
        %v806 = vpop.f32.mrb[0].mxu0
        %v807 = vadd.f32 %v577, %v806
        %v808 = vpop.f32.mrb[0].mxu0
        %v809 = vadd.f32 %v573, %v808
        %v810 = vpop.f32.mrb[0].mxu0
        %v811 = vadd.f32 %v577, %v810
        %812 = vmatprep.mubr.bf16.mxu0 %v513
        %813 = vmatmul.mubr.bf16.gmra.mrb[0].mxu0 %v512
        %v814 = vpop.f32.mrb[0].mxu0
        %v815 = vadd.f32 %v573, %v814
        %v816 = vpop.f32.mrb[0].mxu0
        %v817 = vadd.f32 %v577, %v816
        %v818 = vpop.f32.mrb[0].mxu0
        %v819 = vadd.f32 %v573, %v818
        %v820 = vpop.f32.mrb[0].mxu0
        %v821 = vadd.f32 %v577, %v820
        %822 = vmatprep.mubr.bf16.mxu0 %v515
        %823 = vmatmul.mubr.bf16.gmra.mrb[0].mxu0 %v514
        %v824 = vpop.f32.mrb[0].mxu0
        %v825 = vadd.f32 %v573, %v824
        %v826 = vpop.f32.mrb[0].mxu0
        %v827 = vadd.f32 %v577, %v826
        %v828 = vpop.f32.mrb[0].mxu0
        %v829 = vadd.f32 %v573, %v828
        %v830 = vpop.f32.mrb[0].mxu0
        %v831 = vadd.f32 %v577, %v830
        %832 = vmatprep.mubr.bf16.mxu0 %v517
        %833 = vmatmul.mubr.bf16.gmra.mrb[0].mxu0 %v516
        %v834 = vpop.f32.mrb[0].mxu0
        %v835 = vadd.f32 %v573, %v834
        %v836 = vpop.f32.mrb[0].mxu0
        %v837 = vadd.f32 %v577, %v836
        %v838 = vpop.f32.mrb[0].mxu0
        %v839 = vadd.f32 %v573, %v838
        %v840 = vpop.f32.mrb[0].mxu0
        %v841 = vadd.f32 %v577, %v840
        %842 = vmatprep.mubr.bf16.mxu0 %v519
        %843 = vmatmul.mubr.bf16.gmra.mrb[0].mxu0 %v518
        %v844 = vpop.f32.mrb[0].mxu0
        %v845 = vadd.f32 %v573, %v844
        %v846 = vpop.f32.mrb[0].mxu0
        %v847 = vadd.f32 %v577, %v846
        %v848 = vpop.f32.mrb[0].mxu0
        %v849 = vadd.f32 %v573, %v848
        %v850 = vpop.f32.mrb[0].mxu0
        %v851 = vadd.f32 %v577, %v850
        %852 = vmatprep.mubr.bf16.mxu0 %v521
        %853 = vmatmul.mubr.bf16.gmra.mrb[0].mxu0 %v520
        %v854 = vpop.f32.mrb[0].mxu0
        %v855 = vadd.f32 %v573, %v854
        %v856 = vpop.f32.mrb[0].mxu0
        %v857 = vadd.f32 %v577, %v856
        %v858 = vpop.f32.mrb[0].mxu0
        %v859 = vadd.f32 %v573, %v858
        %v860 = vpop.f32.mrb[0].mxu0
        %v861 = vadd.f32 %v577, %v860
        %862 = vmatprep.mubr.bf16.mxu0 %v523
        %863 = vmatmul.mubr.bf16.gmra.mrb[0].mxu0 %v522
        %v864 = vpop.f32.mrb[0].mxu0
        %v865 = vadd.f32 %v573, %v864
        %v866 = vpop.f32.mrb[0].mxu0
        %v867 = vadd.f32 %v577, %v866
        %v868 = vpop.f32.mrb[0].mxu0
        %v869 = vadd.f32 %v573, %v868
        %v870 = vpop.f32.mrb[0].mxu0
        %v871 = vadd.f32 %v577, %v870
        %872 = vmatprep.mubr.bf16.mxu0 %v525
        %873 = vmatmul.mubr.bf16.gmra.mrb[0].mxu0 %v524
        %v874 = vpop.f32.mrb[0].mxu0
        %v875 = vadd.f32 %v573, %v874
        %v876 = vpop.f32.mrb[0].mxu0
        %v877 = vadd.f32 %v577, %v876
        %v878 = vpop.f32.mrb[0].mxu0
        %v879 = vadd.f32 %v573, %v878
        %v880 = vpop.f32.mrb[0].mxu0
        %v881 = vadd.f32 %v577, %v880
        %882 = vmatprep.mubr.bf16.mxu0 %v527
        %883 = vmatmul.mubr.bf16.gmra.mrb[0].mxu0 %v526
        %v884 = vpop.f32.mrb[0].mxu0
        %v885 = vadd.f32 %v573, %v884
        %v886 = vpop.f32.mrb[0].mxu0
        %v887 = vadd.f32 %v577, %v886
        %v888 = vpop.f32.mrb[0].mxu0
        %v889 = vadd.f32 %v573, %v888
        %v890 = vpop.f32.mrb[0].mxu0
        %v891 = vadd.f32 %v577, %v890
        %892 = vmatprep.mubr.bf16.mxu0 %v529
        %893 = vmatmul.mubr.bf16.gmra.mrb[0].mxu0 %v528
        %v894 = vpop.f32.mrb[0].mxu0
        %v895 = vadd.f32 %v573, %v894
        %v896 = vpop.f32.mrb[0].mxu0
        %v897 = vadd.f32 %v577, %v896
        %v898 = vpop.f32.mrb[0].mxu0
        %v899 = vadd.f32 %v573, %v898
        %v900 = vpop.f32.mrb[0].mxu0
        %v901 = vadd.f32 %v577, %v900
        %902 = vmatprep.mubr.bf16.mxu0 %v531
        %903 = vmatmul.mubr.bf16.gmra.mrb[0].mxu0 %v530
        %v904 = vpop.f32.mrb[0].mxu0
        %v905 = vadd.f32 %v573, %v904
        %v906 = vpop.f32.mrb[0].mxu0
        %v907 = vadd.f32 %v577, %v906
        %v908 = vpop.f32.mrb[0].mxu0
        %v909 = vadd.f32 %v573, %v908
        %v910 = vpop.f32.mrb[0].mxu0
        %v911 = vadd.f32 %v577, %v910
        %912 = vmatprep.mubr.bf16.mxu0 %v533
        %913 = vmatmul.mubr.bf16.gmra.mrb[0].mxu0 %v532
        %v914 = vpop.f32.mrb[0].mxu0
        %v915 = vadd.f32 %v573, %v914
        %v916 = vpop.f32.mrb[0].mxu0
        %v917 = vadd.f32 %v577, %v916
        %v918 = vpop.f32.mrb[0].mxu0
        %v919 = vadd.f32 %v573, %v918
        %v920 = vpop.f32.mrb[0].mxu0
        %v921 = vadd.f32 %v577, %v920
        %922 = vmatprep.mubr.bf16.mxu0 %v535
        %923 = vmatmul.mubr.bf16.gmra.mrb[0].mxu0 %v534
        %v924 = vpop.f32.mrb[0].mxu0
        %v925 = vadd.f32 %v573, %v924
        %v926 = vpop.f32.mrb[0].mxu0
        %v927 = vadd.f32 %v577, %v926
        %v928 = vpop.f32.mrb[0].mxu0
        %v929 = vadd.f32 %v573, %v928
        %v930 = vpop.f32.mrb[0].mxu0
        %v931 = vadd.f32 %v577, %v930
        %932 = vdwg.mxu0
        %v933 = vmul.f32 %v775, 0.088388346
        %v934 = vmul.f32 %v777, 0.088388346
        %v935 = vmul.f32 %v779, 0.088388346
        %v936 = vmul.f32 %v781, 0.088388346
        %v937 = vmul.f32 %v785, 0.088388346
        %v938 = vmul.f32 %v787, 0.088388346
        %v939 = vmul.f32 %v789, 0.088388346
        %v940 = vmul.f32 %v791, 0.088388346
        %v941 = vmul.f32 %v795, 0.088388346
        %v942 = vmul.f32 %v797, 0.088388346
        %v943 = vmul.f32 %v799, 0.088388346
        %v944 = vmul.f32 %v801, 0.088388346
        %v945 = vmul.f32 %v805, 0.088388346
        %v946 = vmul.f32 %v807, 0.088388346
        %v947 = vmul.f32 %v809, 0.088388346
        %v948 = vmul.f32 %v811, 0.088388346
        %v949 = vmul.f32 %v815, 0.088388346
        %v950 = vmul.f32 %v817, 0.088388346
        %v951 = vmul.f32 %v819, 0.088388346
        %v952 = vmul.f32 %v821, 0.088388346
        %v953 = vmul.f32 %v825, 0.088388346
        %v954 = vmul.f32 %v827, 0.088388346
        %v955 = vmul.f32 %v829, 0.088388346
        %v956 = vmul.f32 %v831, 0.088388346
        %v957 = vmul.f32 %v835, 0.088388346
        %v958 = vmul.f32 %v837, 0.088388346
        %v959 = vmul.f32 %v839, 0.088388346
        %v960 = vmul.f32 %v841, 0.088388346
        %v961 = vmul.f32 %v845, 0.088388346
        %v962 = vmul.f32 %v847, 0.088388346
        %v963 = vmul.f32 %v849, 0.088388346
        %v964 = vmul.f32 %v851, 0.088388346
        %v965 = vmul.f32 %v855, 0.088388346
        %v966 = vmul.f32 %v857, 0.088388346
        %v967 = vmul.f32 %v859, 0.088388346
        %v968 = vmul.f32 %v861, 0.088388346
        %v969 = vmul.f32 %v865, 0.088388346
        %v970 = vmul.f32 %v867, 0.088388346
        %v971 = vmul.f32 %v869, 0.088388346
        %v972 = vmul.f32 %v871, 0.088388346
        %v973 = vmul.f32 %v875, 0.088388346
        %v974 = vmul.f32 %v877, 0.088388346
        %v975 = vmul.f32 %v879, 0.088388346
        %v976 = vmul.f32 %v881, 0.088388346
        %v977 = vmul.f32 %v885, 0.088388346
        %v978 = vmul.f32 %v887, 0.088388346
        %v979 = vmul.f32 %v889, 0.088388346
        %v980 = vmul.f32 %v891, 0.088388346
        %v981 = vmul.f32 %v895, 0.088388346
        %v982 = vmul.f32 %v897, 0.088388346
        %v983 = vmul.f32 %v899, 0.088388346
        %v984 = vmul.f32 %v901, 0.088388346
        %v985 = vmul.f32 %v905, 0.088388346
        %v986 = vmul.f32 %v907, 0.088388346
        %v987 = vmul.f32 %v909, 0.088388346
        %v988 = vmul.f32 %v911, 0.088388346
        %v989 = vmul.f32 %v915, 0.088388346
        %v990 = vmul.f32 %v917, 0.088388346
        %v991 = vmul.f32 %v919, 0.088388346
        %v992 = vmul.f32 %v921, 0.088388346
        %v993 = vmul.f32 %v925, 0.088388346
        %v994 = vmul.f32 %v927, 0.088388346
        %v995 = vmul.f32 %v929, 0.088388346
        %v996 = vmul.f32 %v931, 0.088388346
        %v997 = vpack.c.bf16 %v935, %v933
        %v998 = vpack.c.bf16 %v936, %v934
        %v999 = vpack.c.bf16 %v939, %v937
        %v1000 = vpack.c.bf16 %v940, %v938
        %v1001 = vpack.c.bf16 %v943, %v941
        %v1002 = vpack.c.bf16 %v944, %v942
        %v1003 = vpack.c.bf16 %v947, %v945
        %v1004 = vpack.c.bf16 %v948, %v946
        %v1005 = vpack.c.bf16 %v951, %v949
        %v1006 = vpack.c.bf16 %v952, %v950
        %v1007 = vpack.c.bf16 %v955, %v953
        %v1008 = vpack.c.bf16 %v956, %v954
        %v1009 = vpack.c.bf16 %v959, %v957
        %v1010 = vpack.c.bf16 %v960, %v958
        %v1011 = vpack.c.bf16 %v963, %v961
        %v1012 = vpack.c.bf16 %v964, %v962
        %v1013 = vpack.c.bf16 %v967, %v965
        %v1014 = vpack.c.bf16 %v968, %v966
        %v1015 = vpack.c.bf16 %v971, %v969
        %v1016 = vpack.c.bf16 %v972, %v970
        %v1017 = vpack.c.bf16 %v975, %v973
        %v1018 = vpack.c.bf16 %v976, %v974
        %v1019 = vpack.c.bf16 %v979, %v977
        %v1020 = vpack.c.bf16 %v980, %v978
        %v1021 = vpack.c.bf16 %v983, %v981
        %v1022 = vpack.c.bf16 %v984, %v982
        %v1023 = vpack.c.bf16 %v987, %v985
        %v1024 = vpack.c.bf16 %v988, %v986
        %v1025 = vpack.c.bf16 %v991, %v989
        %v1026 = vpack.c.bf16 %v992, %v990
        %v1027 = vpack.c.bf16 %v995, %v993
        %v1028 = vpack.c.bf16 %v996, %v994
        %v1045 = vunpack.c.l.b16 %v997
        %v1046 = vunpack.c.h.b16 %v997
        %v1047 = vunpack.c.l.b16 %v999
        %v1048 = vunpack.c.h.b16 %v999
        %v1049 = vunpack.c.l.b16 %v1001
        %v1050 = vunpack.c.h.b16 %v1001
        %v1051 = vunpack.c.l.b16 %v1003
        %v1052 = vunpack.c.h.b16 %v1003
        %v1053 = vunpack.c.l.b16 %v1005
        %v1054 = vunpack.c.h.b16 %v1005
        %v1055 = vunpack.c.l.b16 %v1007
        %v1056 = vunpack.c.h.b16 %v1007
        %v1057 = vunpack.c.l.b16 %v1009
        %v1058 = vunpack.c.h.b16 %v1009
        %v1059 = vunpack.c.l.b16 %v1011
        %v1060 = vunpack.c.h.b16 %v1011
        %v1061 = vunpack.c.l.b16 %v1013
        %v1062 = vunpack.c.h.b16 %v1013
        %v1063 = vunpack.c.l.b16 %v1015
        %v1064 = vunpack.c.h.b16 %v1015
        %v1065 = vunpack.c.l.b16 %v1017
        %v1066 = vunpack.c.h.b16 %v1017
        %v1067 = vunpack.c.l.b16 %v1019
        %v1068 = vunpack.c.h.b16 %v1019
        %v1069 = vunpack.c.l.b16 %v1021
        %v1070 = vunpack.c.h.b16 %v1021
        %v1071 = vunpack.c.l.b16 %v1023
        %v1072 = vunpack.c.h.b16 %v1023
        %v1073 = vunpack.c.l.b16 %v1025
        %v1074 = vunpack.c.h.b16 %v1025
        %v1075 = vunpack.c.l.b16 %v1027
        %v1076 = vunpack.c.h.b16 %v1027
        %v1077 = vpack.c.b16 %v1045, %v1045
        %v1078 = vpack.c.b16 %v1046, %v1046
        %v1079 = vpack.c.b16 %v1047, %v1047
        %v1080 = vpack.c.b16 %v1048, %v1048
        %v1081 = vpack.c.b16 %v1049, %v1049
        %v1082 = vpack.c.b16 %v1050, %v1050
        %v1083 = vpack.c.b16 %v1051, %v1051
        %v1084 = vpack.c.b16 %v1052, %v1052
        %v1085 = vpack.c.b16 %v1053, %v1053
        %v1086 = vpack.c.b16 %v1054, %v1054
        %v1087 = vpack.c.b16 %v1055, %v1055
        %v1088 = vpack.c.b16 %v1056, %v1056
        %v1089 = vpack.c.b16 %v1057, %v1057
        %v1090 = vpack.c.b16 %v1058, %v1058
        %v1091 = vpack.c.b16 %v1059, %v1059
        %v1092 = vpack.c.b16 %v1060, %v1060
        %v1093 = vpack.c.b16 %v1061, %v1061
        %v1094 = vpack.c.b16 %v1062, %v1062
        %v1095 = vpack.c.b16 %v1063, %v1063
        %v1096 = vpack.c.b16 %v1064, %v1064
        %v1097 = vpack.c.b16 %v1065, %v1065
        %v1098 = vpack.c.b16 %v1066, %v1066
        %v1099 = vpack.c.b16 %v1067, %v1067
        %v1100 = vpack.c.b16 %v1068, %v1068
        %v1101 = vpack.c.b16 %v1069, %v1069
        %v1102 = vpack.c.b16 %v1070, %v1070
        %v1103 = vpack.c.b16 %v1071, %v1071
        %v1104 = vpack.c.b16 %v1072, %v1072
        %v1105 = vpack.c.b16 %v1073, %v1073
        %v1106 = vpack.c.b16 %v1074, %v1074
        %v1107 = vpack.c.b16 %v1075, %v1075
        %v1108 = vpack.c.b16 %v1076, %v1076
        %1141 = vst [vmem:[%s421] sm:$0xf] %v1077
        %1142 = vst [vmem:[%s421 + $0x4] sm:$0xf] %v1078
        %1143 = vst [vmem:[%s421 + $0x8] sm:$0xf] %v1079
        %1144 = vst [vmem:[%s421 + $0xc] sm:$0xf] %v1080
        %1145 = vst [vmem:[%s421 + $0x10] sm:$0xf] %v1081
        %1146 = vst [vmem:[%s421 + $0x14] sm:$0xf] %v1082
        %1147 = vst [vmem:[%s421 + $0x18] sm:$0xf] %v1083
        %1148 = vst [vmem:[%s421 + $0x1c] sm:$0xf] %v1084
        %1149 = vst [vmem:[%s421 + $0x20] sm:$0xf] %v1085
        %1150 = vst [vmem:[%s421 + $0x24] sm:$0xf] %v1086
        %1151 = vst [vmem:[%s421 + $0x28] sm:$0xf] %v1087
        %1152 = vst [vmem:[%s421 + $0x2c] sm:$0xf] %v1088
        %1153 = vst [vmem:[%s421 + $0x30] sm:$0xf] %v1089
        %1154 = vst [vmem:[%s421 + $0x34] sm:$0xf] %v1090
        %1155 = vst [vmem:[%s421 + $0x38] sm:$0xf] %v1091
        %1156 = vst [vmem:[%s421 + $0x3c] sm:$0xf] %v1092
        %1157 = vst [vmem:[%s421 + $0x40] sm:$0xf] %v1093
        %1158 = vst [vmem:[%s421 + $0x44] sm:$0xf] %v1094
        %1159 = vst [vmem:[%s421 + $0x48] sm:$0xf] %v1095
        %1160 = vst [vmem:[%s421 + $0x4c] sm:$0xf] %v1096
        %1161 = vst [vmem:[%s421 + $0x50] sm:$0xf] %v1097
        %1162 = vst [vmem:[%s421 + $0x54] sm:$0xf] %v1098
        %1163 = vst [vmem:[%s421 + $0x58] sm:$0xf] %v1099
        %1164 = vst [vmem:[%s421 + $0x5c] sm:$0xf] %v1100
        %1165 = vst [vmem:[%s421 + $0x60] sm:$0xf] %v1101
        %1166 = vst [vmem:[%s421 + $0x64] sm:$0xf] %v1102
        %1167 = vst [vmem:[%s421 + $0x68] sm:$0xf] %v1103
        %1168 = vst [vmem:[%s421 + $0x6c] sm:$0xf] %v1104
        %1169 = vst [vmem:[%s421 + $0x70] sm:$0xf] %v1105
        %1170 = vst [vmem:[%s421 + $0x74] sm:$0xf] %v1106
        %1171 = vst [vmem:[%s421 + $0x78] sm:$0xf] %v1107
        %1172 = vst [vmem:[%s421 + $0x7c] sm:$0xf] %v1108
        %v1189 = vunpack.c.l.b16 %v998
        %v1190 = vunpack.c.h.b16 %v998
        %v1191 = vunpack.c.l.b16 %v1000
        %v1192 = vunpack.c.h.b16 %v1000
        %v1193 = vunpack.c.l.b16 %v1002
        %v1194 = vunpack.c.h.b16 %v1002
        %v1195 = vunpack.c.l.b16 %v1004
        %v1196 = vunpack.c.h.b16 %v1004
        %v1197 = vunpack.c.l.b16 %v1006
        %v1198 = vunpack.c.h.b16 %v1006
        %v1199 = vunpack.c.l.b16 %v1008
        %v1200 = vunpack.c.h.b16 %v1008
        %v1201 = vunpack.c.l.b16 %v1010
        %v1202 = vunpack.c.h.b16 %v1010
        %v1203 = vunpack.c.l.b16 %v1012
        %v1204 = vunpack.c.h.b16 %v1012
        %v1205 = vunpack.c.l.b16 %v1014
        %v1206 = vunpack.c.h.b16 %v1014
        %v1207 = vunpack.c.l.b16 %v1016
        %v1208 = vunpack.c.h.b16 %v1016
        %v1209 = vunpack.c.l.b16 %v1018
        %v1210 = vunpack.c.h.b16 %v1018
        %v1211 = vunpack.c.l.b16 %v1020
        %v1212 = vunpack.c.h.b16 %v1020
        %v1213 = vunpack.c.l.b16 %v1022
        %v1214 = vunpack.c.h.b16 %v1022
        %v1215 = vunpack.c.l.b16 %v1024
        %v1216 = vunpack.c.h.b16 %v1024
        %v1217 = vunpack.c.l.b16 %v1026
        %v1218 = vunpack.c.h.b16 %v1026
        %v1219 = vunpack.c.l.b16 %v1028
        %v1220 = vunpack.c.h.b16 %v1028
        %v1221 = vpack.c.b16 %v1189, %v1189
        %v1222 = vpack.c.b16 %v1190, %v1190
        %v1223 = vpack.c.b16 %v1191, %v1191
        %v1224 = vpack.c.b16 %v1192, %v1192
        %v1225 = vpack.c.b16 %v1193, %v1193
        %v1226 = vpack.c.b16 %v1194, %v1194
        %v1227 = vpack.c.b16 %v1195, %v1195
        %v1228 = vpack.c.b16 %v1196, %v1196
        %v1229 = vpack.c.b16 %v1197, %v1197
        %v1230 = vpack.c.b16 %v1198, %v1198
        %v1231 = vpack.c.b16 %v1199, %v1199
        %v1232 = vpack.c.b16 %v1200, %v1200
        %v1233 = vpack.c.b16 %v1201, %v1201
        %v1234 = vpack.c.b16 %v1202, %v1202
        %v1235 = vpack.c.b16 %v1203, %v1203
        %v1236 = vpack.c.b16 %v1204, %v1204
        %v1237 = vpack.c.b16 %v1205, %v1205
        %v1238 = vpack.c.b16 %v1206, %v1206
        %v1239 = vpack.c.b16 %v1207, %v1207
        %v1240 = vpack.c.b16 %v1208, %v1208
        %v1241 = vpack.c.b16 %v1209, %v1209
        %v1242 = vpack.c.b16 %v1210, %v1210
        %v1243 = vpack.c.b16 %v1211, %v1211
        %v1244 = vpack.c.b16 %v1212, %v1212
        %v1245 = vpack.c.b16 %v1213, %v1213
        %v1246 = vpack.c.b16 %v1214, %v1214
        %v1247 = vpack.c.b16 %v1215, %v1215
        %v1248 = vpack.c.b16 %v1216, %v1216
        %v1249 = vpack.c.b16 %v1217, %v1217
        %v1250 = vpack.c.b16 %v1218, %v1218
        %v1251 = vpack.c.b16 %v1219, %v1219
        %v1252 = vpack.c.b16 %v1220, %v1220
        %s1285 = scalar_lea.vmem %s421, 128 [#allocation10]
        %1286 = vst [vmem:[%s1285] sm:$0xf] %v1221
        %1287 = vst [vmem:[%s1285 + $0x4] sm:$0xf] %v1222
        %1288 = vst [vmem:[%s1285 + $0x8] sm:$0xf] %v1223
        %1289 = vst [vmem:[%s1285 + $0xc] sm:$0xf] %v1224
        %1290 = vst [vmem:[%s1285 + $0x10] sm:$0xf] %v1225
        %1291 = vst [vmem:[%s1285 + $0x14] sm:$0xf] %v1226
        %1292 = vst [vmem:[%s1285 + $0x18] sm:$0xf] %v1227
        %1293 = vst [vmem:[%s1285 + $0x1c] sm:$0xf] %v1228
        %1294 = vst [vmem:[%s1285 + $0x20] sm:$0xf] %v1229
        %1295 = vst [vmem:[%s1285 + $0x24] sm:$0xf] %v1230
        %1296 = vst [vmem:[%s1285 + $0x28] sm:$0xf] %v1231
        %1297 = vst [vmem:[%s1285 + $0x2c] sm:$0xf] %v1232
        %1298 = vst [vmem:[%s1285 + $0x30] sm:$0xf] %v1233
        %1299 = vst [vmem:[%s1285 + $0x34] sm:$0xf] %v1234
        %1300 = vst [vmem:[%s1285 + $0x38] sm:$0xf] %v1235
        %1301 = vst [vmem:[%s1285 + $0x3c] sm:$0xf] %v1236
        %1302 = vst [vmem:[%s1285 + $0x40] sm:$0xf] %v1237
        %1303 = vst [vmem:[%s1285 + $0x44] sm:$0xf] %v1238
        %1304 = vst [vmem:[%s1285 + $0x48] sm:$0xf] %v1239
        %1305 = vst [vmem:[%s1285 + $0x4c] sm:$0xf] %v1240
        %1306 = vst [vmem:[%s1285 + $0x50] sm:$0xf] %v1241
        %1307 = vst [vmem:[%s1285 + $0x54] sm:$0xf] %v1242
        %1308 = vst [vmem:[%s1285 + $0x58] sm:$0xf] %v1243
        %1309 = vst [vmem:[%s1285 + $0x5c] sm:$0xf] %v1244
        %1310 = vst [vmem:[%s1285 + $0x60] sm:$0xf] %v1245
        %1311 = vst [vmem:[%s1285 + $0x64] sm:$0xf] %v1246
        %1312 = vst [vmem:[%s1285 + $0x68] sm:$0xf] %v1247
        %1313 = vst [vmem:[%s1285 + $0x6c] sm:$0xf] %v1248
        %1314 = vst [vmem:[%s1285 + $0x70] sm:$0xf] %v1249
        %1315 = vst [vmem:[%s1285 + $0x74] sm:$0xf] %v1250
        %1316 = vst [vmem:[%s1285 + $0x78] sm:$0xf] %v1251
        %1317 = vst [vmem:[%s1285 + $0x7c] sm:$0xf] %v1252
        %v1318 = vld [vmem:[#allocation7] sm:$0xff]
        %v1319 = vld [vmem:[#allocation7 + $0x8] sm:$0xff]
        %v1320 = vld [vmem:[#allocation7 + $0x10] sm:$0xff]
        %v1321 = vld [vmem:[#allocation7 + $0x18] sm:$0xff]
        %v1322 = vld [vmem:[#allocation7 + $0x20] sm:$0xff]
        %v1323 = vld [vmem:[#allocation7 + $0x28] sm:$0xff]
        %v1324 = vld [vmem:[#allocation7 + $0x30] sm:$0xff]
        %v1325 = vld [vmem:[#allocation7 + $0x38] sm:$0xff]
        %v1326 = vld [vmem:[#allocation7 + $0x40] sm:$0xff]
        %v1327 = vld [vmem:[#allocation7 + $0x48] sm:$0xff]
        %v1328 = vld [vmem:[#allocation7 + $0x50] sm:$0xff]
        %v1329 = vld [vmem:[#allocation7 + $0x58] sm:$0xff]
        %v1330 = vld [vmem:[#allocation7 + $0x60] sm:$0xff]
        %v1331 = vld [vmem:[#allocation7 + $0x68] sm:$0xff]
        %v1332 = vld [vmem:[#allocation7 + $0x70] sm:$0xff]
        %v1333 = vld [vmem:[#allocation7 + $0x78] sm:$0xff]
        %v1334 = vld [vmem:[#allocation7 + $0x80] sm:$0xff]
        %v1335 = vld [vmem:[#allocation7 + $0x88] sm:$0xff]
        %v1336 = vld [vmem:[#allocation7 + $0x90] sm:$0xff]
        %v1337 = vld [vmem:[#allocation7 + $0x98] sm:$0xff]
        %v1338 = vld [vmem:[#allocation7 + $0xa0] sm:$0xff]
        %v1339 = vld [vmem:[#allocation7 + $0xa8] sm:$0xff]
        %v1340 = vld [vmem:[#allocation7 + $0xb0] sm:$0xff]
        %v1341 = vld [vmem:[#allocation7 + $0xb8] sm:$0xff]
        %v1342 = vld [vmem:[#allocation7 + $0xc0] sm:$0xff]
        %v1343 = vld [vmem:[#allocation7 + $0xc8] sm:$0xff]
        %v1344 = vld [vmem:[#allocation7 + $0xd0] sm:$0xff]
        %v1345 = vld [vmem:[#allocation7 + $0xd8] sm:$0xff]
        %v1346 = vld [vmem:[#allocation7 + $0xe0] sm:$0xff]
        %v1347 = vld [vmem:[#allocation7 + $0xe8] sm:$0xff]
        %v1348 = vld [vmem:[#allocation7 + $0xf0] sm:$0xff]
        %v1349 = vld [vmem:[#allocation7 + $0xf8] sm:$0xff]
        %v1350 = vld [vmem:[%s5] sm:$0x3]
        %v1352 = vlaneseq
        %v1353 = vshrl.u32 %v1352, 7
        %v1354 = vsub.s32 0, %v1353
        %v1355 = vrot.slane %v1350, %v1354
        %v1356 = vlaneseq
        %v1357 = vshrl.u32 %v1356, 7
        %v1358 = vsub.s32 1, %v1357
        %v1359 = vrot.slane %v1350, %v1358
        %v1394 = vunpack.c.l.b16 %v1318
        %v1395 = vunpack.c.h.b16 %v1318
        %v1396 = vunpack.c.l.b16 %v1319
        %v1397 = vunpack.c.h.b16 %v1319
        %v1398 = vunpack.c.l.b16 %v1320
        %v1399 = vunpack.c.h.b16 %v1320
        %v1400 = vunpack.c.l.b16 %v1321
        %v1401 = vunpack.c.h.b16 %v1321
        %v1402 = vunpack.c.l.b16 %v1322
        %v1403 = vunpack.c.h.b16 %v1322
        %v1404 = vunpack.c.l.b16 %v1323
        %v1405 = vunpack.c.h.b16 %v1323
        %v1406 = vunpack.c.l.b16 %v1324
        %v1407 = vunpack.c.h.b16 %v1324
        %v1408 = vunpack.c.l.b16 %v1325
        %v1409 = vunpack.c.h.b16 %v1325
        %v1410 = vunpack.c.l.b16 %v1326
        %v1411 = vunpack.c.h.b16 %v1326
        %v1412 = vunpack.c.l.b16 %v1327
        %v1413 = vunpack.c.h.b16 %v1327
        %v1414 = vunpack.c.l.b16 %v1328
        %v1415 = vunpack.c.h.b16 %v1328
        %v1416 = vunpack.c.l.b16 %v1329
        %v1417 = vunpack.c.h.b16 %v1329
        %v1418 = vunpack.c.l.b16 %v1330
        %v1419 = vunpack.c.h.b16 %v1330
        %v1420 = vunpack.c.l.b16 %v1331
        %v1421 = vunpack.c.h.b16 %v1331
        %v1422 = vunpack.c.l.b16 %v1332
        %v1423 = vunpack.c.h.b16 %v1332
        %v1424 = vunpack.c.l.b16 %v1333
        %v1425 = vunpack.c.h.b16 %v1333
        %v1426 = vunpack.c.l.b16 %v1334
        %v1427 = vunpack.c.h.b16 %v1334
        %v1428 = vunpack.c.l.b16 %v1335
        %v1429 = vunpack.c.h.b16 %v1335
        %v1430 = vunpack.c.l.b16 %v1336
        %v1431 = vunpack.c.h.b16 %v1336
        %v1432 = vunpack.c.l.b16 %v1337
        %v1433 = vunpack.c.h.b16 %v1337
        %v1434 = vunpack.c.l.b16 %v1338
        %v1435 = vunpack.c.h.b16 %v1338
        %v1436 = vunpack.c.l.b16 %v1339
        %v1437 = vunpack.c.h.b16 %v1339
        %v1438 = vunpack.c.l.b16 %v1340
        %v1439 = vunpack.c.h.b16 %v1340
        %v1440 = vunpack.c.l.b16 %v1341
        %v1441 = vunpack.c.h.b16 %v1341
        %v1442 = vunpack.c.l.b16 %v1342
        %v1443 = vunpack.c.h.b16 %v1342
        %v1444 = vunpack.c.l.b16 %v1343
        %v1445 = vunpack.c.h.b16 %v1343
        %v1446 = vunpack.c.l.b16 %v1344
        %v1447 = vunpack.c.h.b16 %v1344
        %v1448 = vunpack.c.l.b16 %v1345
        %v1449 = vunpack.c.h.b16 %v1345
        %v1450 = vunpack.c.l.b16 %v1346
        %v1451 = vunpack.c.h.b16 %v1346
        %v1452 = vunpack.c.l.b16 %v1347
        %v1453 = vunpack.c.h.b16 %v1347
        %v1454 = vunpack.c.l.b16 %v1348
        %v1455 = vunpack.c.h.b16 %v1348
        %v1456 = vunpack.c.l.b16 %v1349
        %v1457 = vunpack.c.h.b16 %v1349
        %v1458 = vpack.c.b16 %v1396, %v1394
        %v1459 = vpack.c.b16 %v1397, %v1395
        %v1460 = vpack.c.b16 %v1400, %v1398
        %v1461 = vpack.c.b16 %v1401, %v1399
        %v1462 = vpack.c.b16 %v1404, %v1402
        %v1463 = vpack.c.b16 %v1405, %v1403
        %v1464 = vpack.c.b16 %v1408, %v1406
        %v1465 = vpack.c.b16 %v1409, %v1407
        %v1466 = vpack.c.b16 %v1412, %v1410
        %v1467 = vpack.c.b16 %v1413, %v1411
        %v1468 = vpack.c.b16 %v1416, %v1414
        %v1469 = vpack.c.b16 %v1417, %v1415
        %v1470 = vpack.c.b16 %v1420, %v1418
        %v1471 = vpack.c.b16 %v1421, %v1419
        %v1472 = vpack.c.b16 %v1424, %v1422
        %v1473 = vpack.c.b16 %v1425, %v1423
        %v1474 = vpack.c.b16 %v1428, %v1426
        %v1475 = vpack.c.b16 %v1429, %v1427
        %v1476 = vpack.c.b16 %v1432, %v1430
        %v1477 = vpack.c.b16 %v1433, %v1431
        %v1478 = vpack.c.b16 %v1436, %v1434
        %v1479 = vpack.c.b16 %v1437, %v1435
        %v1480 = vpack.c.b16 %v1440, %v1438
        %v1481 = vpack.c.b16 %v1441, %v1439
        %v1482 = vpack.c.b16 %v1444, %v1442
        %v1483 = vpack.c.b16 %v1445, %v1443
        %v1484 = vpack.c.b16 %v1448, %v1446
        %v1485 = vpack.c.b16 %v1449, %v1447
        %v1486 = vpack.c.b16 %v1452, %v1450
        %v1487 = vpack.c.b16 %v1453, %v1451
        %v1488 = vpack.c.b16 %v1456, %v1454
        %v1489 = vpack.c.b16 %v1457, %v1455
        %1522 = vmatprep.subr.bf16.mxu0 %v1459
        %1523 = vmatpush1.bf16.msra.mxu0 %v1458
        %1524 = vmatprep.subr.bf16.mxu0 %v1461
        %1525 = vmatpush1.bf16.msra.mxu0 %v1460
        %1526 = vmatprep.subr.bf16.mxu0 %v1463
        %1527 = vmatpush1.bf16.msra.mxu0 %v1462
        %1528 = vmatprep.subr.bf16.mxu0 %v1465
        %1529 = vmatpush1.bf16.msra.mxu0 %v1464
        %1530 = vmatprep.subr.bf16.mxu0 %v1467
        %1531 = vmatpush1.bf16.msra.mxu0 %v1466
        %1532 = vmatprep.subr.bf16.mxu0 %v1469
        %1533 = vmatpush1.bf16.msra.mxu0 %v1468
        %1534 = vmatprep.subr.bf16.mxu0 %v1471
        %1535 = vmatpush1.bf16.msra.mxu0 %v1470
        %1536 = vmatprep.subr.bf16.mxu0 %v1473
        %1537 = vmatpush1.bf16.msra.mxu0 %v1472
        %1538 = vmatprep.subr.bf16.mxu0 %v1475
        %1539 = vmatpush1.bf16.msra.mxu0 %v1474
        %1540 = vmatprep.subr.bf16.mxu0 %v1477
        %1541 = vmatpush1.bf16.msra.mxu0 %v1476
        %1542 = vmatprep.subr.bf16.mxu0 %v1479
        %1543 = vmatpush1.bf16.msra.mxu0 %v1478
        %1544 = vmatprep.subr.bf16.mxu0 %v1481
        %1545 = vmatpush1.bf16.msra.mxu0 %v1480
        %1546 = vmatprep.subr.bf16.mxu0 %v1483
        %1547 = vmatpush1.bf16.msra.mxu0 %v1482
        %1548 = vmatprep.subr.bf16.mxu0 %v1485
        %1549 = vmatpush1.bf16.msra.mxu0 %v1484
        %1550 = vmatprep.subr.bf16.mxu0 %v1487
        %1551 = vmatpush1.bf16.msra.mxu0 %v1486
        %1552 = vmatprep.subr.bf16.mxu0 %v1489
        %1553 = vmatpush1.bf16.msra.mxu0 %v1488
        %1554 = vmatprep.mubr.bf16.mxu0 %v505
        %1555 = vmatmul.mubr.bf16.gmra.mrb[0].mxu0 %v504
        %v1556 = vpop.f32.mrb[0].mxu0
        %v1557 = vadd.f32 %v1355, %v1556
        %v1558 = vpop.f32.mrb[0].mxu0
        %v1559 = vadd.f32 %v1359, %v1558
        %v1560 = vpop.f32.mrb[0].mxu0
        %v1561 = vadd.f32 %v1355, %v1560
        %v1562 = vpop.f32.mrb[0].mxu0
        %v1563 = vadd.f32 %v1359, %v1562
        %1564 = vmatprep.mubr.bf16.mxu0 %v507
        %1565 = vmatmul.mubr.bf16.gmra.mrb[0].mxu0 %v506
        %v1566 = vpop.f32.mrb[0].mxu0
        %v1567 = vadd.f32 %v1355, %v1566
        %v1568 = vpop.f32.mrb[0].mxu0
        %v1569 = vadd.f32 %v1359, %v1568
        %v1570 = vpop.f32.mrb[0].mxu0
        %v1571 = vadd.f32 %v1355, %v1570
        %v1572 = vpop.f32.mrb[0].mxu0
        %v1573 = vadd.f32 %v1359, %v1572
        %1574 = vmatprep.mubr.bf16.mxu0 %v509
        %1575 = vmatmul.mubr.bf16.gmra.mrb[0].mxu0 %v508
        %v1576 = vpop.f32.mrb[0].mxu0
        %v1577 = vadd.f32 %v1355, %v1576
        %v1578 = vpop.f32.mrb[0].mxu0
        %v1579 = vadd.f32 %v1359, %v1578
        %v1580 = vpop.f32.mrb[0].mxu0
        %v1581 = vadd.f32 %v1355, %v1580
        %v1582 = vpop.f32.mrb[0].mxu0
        %v1583 = vadd.f32 %v1359, %v1582
        %1584 = vmatprep.mubr.bf16.mxu0 %v511
        %1585 = vmatmul.mubr.bf16.gmra.mrb[0].mxu0 %v510
        %v1586 = vpop.f32.mrb[0].mxu0
        %v1587 = vadd.f32 %v1355, %v1586
        %v1588 = vpop.f32.mrb[0].mxu0
        %v1589 = vadd.f32 %v1359, %v1588
        %v1590 = vpop.f32.mrb[0].mxu0
        %v1591 = vadd.f32 %v1355, %v1590
        %v1592 = vpop.f32.mrb[0].mxu0
        %v1593 = vadd.f32 %v1359, %v1592
        %1594 = vmatprep.mubr.bf16.mxu0 %v513
        %1595 = vmatmul.mubr.bf16.gmra.mrb[0].mxu0 %v512
        %v1596 = vpop.f32.mrb[0].mxu0
        %v1597 = vadd.f32 %v1355, %v1596
        %v1598 = vpop.f32.mrb[0].mxu0
        %v1599 = vadd.f32 %v1359, %v1598
        %v1600 = vpop.f32.mrb[0].mxu0
        %v1601 = vadd.f32 %v1355, %v1600
        %v1602 = vpop.f32.mrb[0].mxu0
        %v1603 = vadd.f32 %v1359, %v1602
        %1604 = vmatprep.mubr.bf16.mxu0 %v515
        %1605 = vmatmul.mubr.bf16.gmra.mrb[0].mxu0 %v514
        %v1606 = vpop.f32.mrb[0].mxu0
        %v1607 = vadd.f32 %v1355, %v1606
        %v1608 = vpop.f32.mrb[0].mxu0
        %v1609 = vadd.f32 %v1359, %v1608
        %v1610 = vpop.f32.mrb[0].mxu0
        %v1611 = vadd.f32 %v1355, %v1610
        %v1612 = vpop.f32.mrb[0].mxu0
        %v1613 = vadd.f32 %v1359, %v1612
        %1614 = vmatprep.mubr.bf16.mxu0 %v517
        %1615 = vmatmul.mubr.bf16.gmra.mrb[0].mxu0 %v516
        %v1616 = vpop.f32.mrb[0].mxu0
        %v1617 = vadd.f32 %v1355, %v1616
        %v1618 = vpop.f32.mrb[0].mxu0
        %v1619 = vadd.f32 %v1359, %v1618
        %v1620 = vpop.f32.mrb[0].mxu0
        %v1621 = vadd.f32 %v1355, %v1620
        %v1622 = vpop.f32.mrb[0].mxu0
        %v1623 = vadd.f32 %v1359, %v1622
        %1624 = vmatprep.mubr.bf16.mxu0 %v519
        %1625 = vmatmul.mubr.bf16.gmra.mrb[0].mxu0 %v518
        %v1626 = vpop.f32.mrb[0].mxu0
        %v1627 = vadd.f32 %v1355, %v1626
        %v1628 = vpop.f32.mrb[0].mxu0
        %v1629 = vadd.f32 %v1359, %v1628
        %v1630 = vpop.f32.mrb[0].mxu0
        %v1631 = vadd.f32 %v1355, %v1630
        %v1632 = vpop.f32.mrb[0].mxu0
        %v1633 = vadd.f32 %v1359, %v1632
        %1634 = vmatprep.mubr.bf16.mxu0 %v521
        %1635 = vmatmul.mubr.bf16.gmra.mrb[0].mxu0 %v520
        %v1636 = vpop.f32.mrb[0].mxu0
        %v1637 = vadd.f32 %v1355, %v1636
        %v1638 = vpop.f32.mrb[0].mxu0
        %v1639 = vadd.f32 %v1359, %v1638
        %v1640 = vpop.f32.mrb[0].mxu0
        %v1641 = vadd.f32 %v1355, %v1640
        %v1642 = vpop.f32.mrb[0].mxu0
        %v1643 = vadd.f32 %v1359, %v1642
        %1644 = vmatprep.mubr.bf16.mxu0 %v523
        %1645 = vmatmul.mubr.bf16.gmra.mrb[0].mxu0 %v522
        %v1646 = vpop.f32.mrb[0].mxu0
        %v1647 = vadd.f32 %v1355, %v1646
        %v1648 = vpop.f32.mrb[0].mxu0
        %v1649 = vadd.f32 %v1359, %v1648
        %v1650 = vpop.f32.mrb[0].mxu0
        %v1651 = vadd.f32 %v1355, %v1650
        %v1652 = vpop.f32.mrb[0].mxu0
        %v1653 = vadd.f32 %v1359, %v1652
        %1654 = vmatprep.mubr.bf16.mxu0 %v525
        %1655 = vmatmul.mubr.bf16.gmra.mrb[0].mxu0 %v524
        %v1656 = vpop.f32.mrb[0].mxu0
        %v1657 = vadd.f32 %v1355, %v1656
        %v1658 = vpop.f32.mrb[0].mxu0
        %v1659 = vadd.f32 %v1359, %v1658
        %v1660 = vpop.f32.mrb[0].mxu0
        %v1661 = vadd.f32 %v1355, %v1660
        %v1662 = vpop.f32.mrb[0].mxu0
        %v1663 = vadd.f32 %v1359, %v1662
        %1664 = vmatprep.mubr.bf16.mxu0 %v527
        %1665 = vmatmul.mubr.bf16.gmra.mrb[0].mxu0 %v526
        %v1666 = vpop.f32.mrb[0].mxu0
        %v1667 = vadd.f32 %v1355, %v1666
        %v1668 = vpop.f32.mrb[0].mxu0
        %v1669 = vadd.f32 %v1359, %v1668
        %v1670 = vpop.f32.mrb[0].mxu0
        %v1671 = vadd.f32 %v1355, %v1670
        %v1672 = vpop.f32.mrb[0].mxu0
        %v1673 = vadd.f32 %v1359, %v1672
        %1674 = vmatprep.mubr.bf16.mxu0 %v529
        %1675 = vmatmul.mubr.bf16.gmra.mrb[0].mxu0 %v528
        %v1676 = vpop.f32.mrb[0].mxu0
        %v1677 = vadd.f32 %v1355, %v1676
        %v1678 = vpop.f32.mrb[0].mxu0
        %v1679 = vadd.f32 %v1359, %v1678
        %v1680 = vpop.f32.mrb[0].mxu0
        %v1681 = vadd.f32 %v1355, %v1680
        %v1682 = vpop.f32.mrb[0].mxu0
        %v1683 = vadd.f32 %v1359, %v1682
        %1684 = vmatprep.mubr.bf16.mxu0 %v531
        %1685 = vmatmul.mubr.bf16.gmra.mrb[0].mxu0 %v530
        %v1686 = vpop.f32.mrb[0].mxu0
        %v1687 = vadd.f32 %v1355, %v1686
        %v1688 = vpop.f32.mrb[0].mxu0
        %v1689 = vadd.f32 %v1359, %v1688
        %v1690 = vpop.f32.mrb[0].mxu0
        %v1691 = vadd.f32 %v1355, %v1690
        %v1692 = vpop.f32.mrb[0].mxu0
        %v1693 = vadd.f32 %v1359, %v1692
        %1694 = vmatprep.mubr.bf16.mxu0 %v533
        %1695 = vmatmul.mubr.bf16.gmra.mrb[0].mxu0 %v532
        %v1696 = vpop.f32.mrb[0].mxu0
        %v1697 = vadd.f32 %v1355, %v1696
        %v1698 = vpop.f32.mrb[0].mxu0
        %v1699 = vadd.f32 %v1359, %v1698
        %v1700 = vpop.f32.mrb[0].mxu0
        %v1701 = vadd.f32 %v1355, %v1700
        %v1702 = vpop.f32.mrb[0].mxu0
        %v1703 = vadd.f32 %v1359, %v1702
        %1704 = vmatprep.mubr.bf16.mxu0 %v535
        %1705 = vmatmul.mubr.bf16.gmra.mrb[0].mxu0 %v534
        %v1706 = vpop.f32.mrb[0].mxu0
        %v1707 = vadd.f32 %v1355, %v1706
        %v1708 = vpop.f32.mrb[0].mxu0
        %v1709 = vadd.f32 %v1359, %v1708
        %v1710 = vpop.f32.mrb[0].mxu0
        %v1711 = vadd.f32 %v1355, %v1710
        %v1712 = vpop.f32.mrb[0].mxu0
        %v1713 = vadd.f32 %v1359, %v1712
        %1714 = vdwg.mxu0
        %v1715 = vpack.c.bf16 %v1561, %v1557
        %v1716 = vpack.c.bf16 %v1563, %v1559
        %v1717 = vpack.c.bf16 %v1571, %v1567
        %v1718 = vpack.c.bf16 %v1573, %v1569
        %v1719 = vpack.c.bf16 %v1581, %v1577
        %v1720 = vpack.c.bf16 %v1583, %v1579
        %v1721 = vpack.c.bf16 %v1591, %v1587
        %v1722 = vpack.c.bf16 %v1593, %v1589
        %v1723 = vpack.c.bf16 %v1601, %v1597
        %v1724 = vpack.c.bf16 %v1603, %v1599
        %v1725 = vpack.c.bf16 %v1611, %v1607
        %v1726 = vpack.c.bf16 %v1613, %v1609
        %v1727 = vpack.c.bf16 %v1621, %v1617
        %v1728 = vpack.c.bf16 %v1623, %v1619
        %v1729 = vpack.c.bf16 %v1631, %v1627
        %v1730 = vpack.c.bf16 %v1633, %v1629
        %v1731 = vpack.c.bf16 %v1641, %v1637
        %v1732 = vpack.c.bf16 %v1643, %v1639
        %v1733 = vpack.c.bf16 %v1651, %v1647
        %v1734 = vpack.c.bf16 %v1653, %v1649
        %v1735 = vpack.c.bf16 %v1661, %v1657
        %v1736 = vpack.c.bf16 %v1663, %v1659
        %v1737 = vpack.c.bf16 %v1671, %v1667
        %v1738 = vpack.c.bf16 %v1673, %v1669
        %v1739 = vpack.c.bf16 %v1681, %v1677
        %v1740 = vpack.c.bf16 %v1683, %v1679
        %v1741 = vpack.c.bf16 %v1691, %v1687
        %v1742 = vpack.c.bf16 %v1693, %v1689
        %v1743 = vpack.c.bf16 %v1701, %v1697
        %v1744 = vpack.c.bf16 %v1703, %v1699
        %v1745 = vpack.c.bf16 %v1711, %v1707
        %v1746 = vpack.c.bf16 %v1713, %v1709
        %v1763 = vunpack.c.l.b16 %v1715
        %v1764 = vunpack.c.h.b16 %v1715
        %v1765 = vunpack.c.l.b16 %v1717
        %v1766 = vunpack.c.h.b16 %v1717
        %v1767 = vunpack.c.l.b16 %v1719
        %v1768 = vunpack.c.h.b16 %v1719
        %v1769 = vunpack.c.l.b16 %v1721
        %v1770 = vunpack.c.h.b16 %v1721
        %v1771 = vunpack.c.l.b16 %v1723
        %v1772 = vunpack.c.h.b16 %v1723
        %v1773 = vunpack.c.l.b16 %v1725
        %v1774 = vunpack.c.h.b16 %v1725
        %v1775 = vunpack.c.l.b16 %v1727
        %v1776 = vunpack.c.h.b16 %v1727
        %v1777 = vunpack.c.l.b16 %v1729
        %v1778 = vunpack.c.h.b16 %v1729
        %v1779 = vunpack.c.l.b16 %v1731
        %v1780 = vunpack.c.h.b16 %v1731
        %v1781 = vunpack.c.l.b16 %v1733
        %v1782 = vunpack.c.h.b16 %v1733
        %v1783 = vunpack.c.l.b16 %v1735
        %v1784 = vunpack.c.h.b16 %v1735
        %v1785 = vunpack.c.l.b16 %v1737
        %v1786 = vunpack.c.h.b16 %v1737
        %v1787 = vunpack.c.l.b16 %v1739
        %v1788 = vunpack.c.h.b16 %v1739
        %v1789 = vunpack.c.l.b16 %v1741
        %v1790 = vunpack.c.h.b16 %v1741
        %v1791 = vunpack.c.l.b16 %v1743
        %v1792 = vunpack.c.h.b16 %v1743
        %v1793 = vunpack.c.l.b16 %v1745
        %v1794 = vunpack.c.h.b16 %v1745
        %v1795 = vpack.c.b16 %v1763, %v1763
        %v1796 = vpack.c.b16 %v1764, %v1764
        %v1797 = vpack.c.b16 %v1765, %v1765
        %v1798 = vpack.c.b16 %v1766, %v1766
        %v1799 = vpack.c.b16 %v1767, %v1767
        %v1800 = vpack.c.b16 %v1768, %v1768
        %v1801 = vpack.c.b16 %v1769, %v1769
        %v1802 = vpack.c.b16 %v1770, %v1770
        %v1803 = vpack.c.b16 %v1771, %v1771
        %v1804 = vpack.c.b16 %v1772, %v1772
        %v1805 = vpack.c.b16 %v1773, %v1773
        %v1806 = vpack.c.b16 %v1774, %v1774
        %v1807 = vpack.c.b16 %v1775, %v1775
        %v1808 = vpack.c.b16 %v1776, %v1776
        %v1809 = vpack.c.b16 %v1777, %v1777
        %v1810 = vpack.c.b16 %v1778, %v1778
        %v1811 = vpack.c.b16 %v1779, %v1779
        %v1812 = vpack.c.b16 %v1780, %v1780
        %v1813 = vpack.c.b16 %v1781, %v1781
        %v1814 = vpack.c.b16 %v1782, %v1782
        %v1815 = vpack.c.b16 %v1783, %v1783
        %v1816 = vpack.c.b16 %v1784, %v1784
        %v1817 = vpack.c.b16 %v1785, %v1785
        %v1818 = vpack.c.b16 %v1786, %v1786
        %v1819 = vpack.c.b16 %v1787, %v1787
        %v1820 = vpack.c.b16 %v1788, %v1788
        %v1821 = vpack.c.b16 %v1789, %v1789
        %v1822 = vpack.c.b16 %v1790, %v1790
        %v1823 = vpack.c.b16 %v1791, %v1791
        %v1824 = vpack.c.b16 %v1792, %v1792
        %v1825 = vpack.c.b16 %v1793, %v1793
        %v1826 = vpack.c.b16 %v1794, %v1794
        %1859 = vst [vmem:[%s428] sm:$0xf] %v1795
        %1860 = vst [vmem:[%s428 + $0x4] sm:$0xf] %v1796
        %1861 = vst [vmem:[%s428 + $0x8] sm:$0xf] %v1797
        %1862 = vst [vmem:[%s428 + $0xc] sm:$0xf] %v1798
        %1863 = vst [vmem:[%s428 + $0x10] sm:$0xf] %v1799
        %1864 = vst [vmem:[%s428 + $0x14] sm:$0xf] %v1800
        %1865 = vst [vmem:[%s428 + $0x18] sm:$0xf] %v1801
        %1866 = vst [vmem:[%s428 + $0x1c] sm:$0xf] %v1802
        %1867 = vst [vmem:[%s428 + $0x20] sm:$0xf] %v1803
        %1868 = vst [vmem:[%s428 + $0x24] sm:$0xf] %v1804
        %1869 = vst [vmem:[%s428 + $0x28] sm:$0xf] %v1805
        %1870 = vst [vmem:[%s428 + $0x2c] sm:$0xf] %v1806
        %1871 = vst [vmem:[%s428 + $0x30] sm:$0xf] %v1807
        %1872 = vst [vmem:[%s428 + $0x34] sm:$0xf] %v1808
        %1873 = vst [vmem:[%s428 + $0x38] sm:$0xf] %v1809
        %1874 = vst [vmem:[%s428 + $0x3c] sm:$0xf] %v1810
        %1875 = vst [vmem:[%s428 + $0x40] sm:$0xf] %v1811
        %1876 = vst [vmem:[%s428 + $0x44] sm:$0xf] %v1812
        %1877 = vst [vmem:[%s428 + $0x48] sm:$0xf] %v1813
        %1878 = vst [vmem:[%s428 + $0x4c] sm:$0xf] %v1814
        %1879 = vst [vmem:[%s428 + $0x50] sm:$0xf] %v1815
        %1880 = vst [vmem:[%s428 + $0x54] sm:$0xf] %v1816
        %1881 = vst [vmem:[%s428 + $0x58] sm:$0xf] %v1817
        %1882 = vst [vmem:[%s428 + $0x5c] sm:$0xf] %v1818
        %1883 = vst [vmem:[%s428 + $0x60] sm:$0xf] %v1819
        %1884 = vst [vmem:[%s428 + $0x64] sm:$0xf] %v1820
        %1885 = vst [vmem:[%s428 + $0x68] sm:$0xf] %v1821
        %1886 = vst [vmem:[%s428 + $0x6c] sm:$0xf] %v1822
        %1887 = vst [vmem:[%s428 + $0x70] sm:$0xf] %v1823
        %1888 = vst [vmem:[%s428 + $0x74] sm:$0xf] %v1824
        %1889 = vst [vmem:[%s428 + $0x78] sm:$0xf] %v1825
        %1890 = vst [vmem:[%s428 + $0x7c] sm:$0xf] %v1826
        %v1907 = vunpack.c.l.b16 %v1716
        %v1908 = vunpack.c.h.b16 %v1716
        %v1909 = vunpack.c.l.b16 %v1718
        %v1910 = vunpack.c.h.b16 %v1718
        %v1911 = vunpack.c.l.b16 %v1720
        %v1912 = vunpack.c.h.b16 %v1720
        %v1913 = vunpack.c.l.b16 %v1722
        %v1914 = vunpack.c.h.b16 %v1722
        %v1915 = vunpack.c.l.b16 %v1724
        %v1916 = vunpack.c.h.b16 %v1724
        %v1917 = vunpack.c.l.b16 %v1726
        %v1918 = vunpack.c.h.b16 %v1726
        %v1919 = vunpack.c.l.b16 %v1728
        %v1920 = vunpack.c.h.b16 %v1728
        %v1921 = vunpack.c.l.b16 %v1730
        %v1922 = vunpack.c.h.b16 %v1730
        %v1923 = vunpack.c.l.b16 %v1732
        %v1924 = vunpack.c.h.b16 %v1732
        %v1925 = vunpack.c.l.b16 %v1734
        %v1926 = vunpack.c.h.b16 %v1734
        %v1927 = vunpack.c.l.b16 %v1736
        %v1928 = vunpack.c.h.b16 %v1736
        %v1929 = vunpack.c.l.b16 %v1738
        %v1930 = vunpack.c.h.b16 %v1738
        %v1931 = vunpack.c.l.b16 %v1740
        %v1932 = vunpack.c.h.b16 %v1740
        %v1933 = vunpack.c.l.b16 %v1742
        %v1934 = vunpack.c.h.b16 %v1742
        %v1935 = vunpack.c.l.b16 %v1744
        %v1936 = vunpack.c.h.b16 %v1744
        %v1937 = vunpack.c.l.b16 %v1746
        %v1938 = vunpack.c.h.b16 %v1746
        %v1939 = vpack.c.b16 %v1907, %v1907
        %v1940 = vpack.c.b16 %v1908, %v1908
        %v1941 = vpack.c.b16 %v1909, %v1909
        %v1942 = vpack.c.b16 %v1910, %v1910
        %v1943 = vpack.c.b16 %v1911, %v1911
        %v1944 = vpack.c.b16 %v1912, %v1912
        %v1945 = vpack.c.b16 %v1913, %v1913
        %v1946 = vpack.c.b16 %v1914, %v1914
        %v1947 = vpack.c.b16 %v1915, %v1915
        %v1948 = vpack.c.b16 %v1916, %v1916
        %v1949 = vpack.c.b16 %v1917, %v1917
        %v1950 = vpack.c.b16 %v1918, %v1918
        %v1951 = vpack.c.b16 %v1919, %v1919
        %v1952 = vpack.c.b16 %v1920, %v1920
        %v1953 = vpack.c.b16 %v1921, %v1921
        %v1954 = vpack.c.b16 %v1922, %v1922
        %v1955 = vpack.c.b16 %v1923, %v1923
        %v1956 = vpack.c.b16 %v1924, %v1924
        %v1957 = vpack.c.b16 %v1925, %v1925
        %v1958 = vpack.c.b16 %v1926, %v1926
        %v1959 = vpack.c.b16 %v1927, %v1927
        %v1960 = vpack.c.b16 %v1928, %v1928
        %v1961 = vpack.c.b16 %v1929, %v1929
        %v1962 = vpack.c.b16 %v1930, %v1930
        %v1963 = vpack.c.b16 %v1931, %v1931
        %v1964 = vpack.c.b16 %v1932, %v1932
        %v1965 = vpack.c.b16 %v1933, %v1933
        %v1966 = vpack.c.b16 %v1934, %v1934
        %v1967 = vpack.c.b16 %v1935, %v1935
        %v1968 = vpack.c.b16 %v1936, %v1936
        %v1969 = vpack.c.b16 %v1937, %v1937
        %v1970 = vpack.c.b16 %v1938, %v1938
        %s2003 = scalar_lea.vmem %s428, 128 [#allocation11]
        %2004 = vst [vmem:[%s2003] sm:$0xf] %v1939
        %2005 = vst [vmem:[%s2003 + $0x4] sm:$0xf] %v1940
        %2006 = vst [vmem:[%s2003 + $0x8] sm:$0xf] %v1941
        %2007 = vst [vmem:[%s2003 + $0xc] sm:$0xf] %v1942
        %2008 = vst [vmem:[%s2003 + $0x10] sm:$0xf] %v1943
        %2009 = vst [vmem:[%s2003 + $0x14] sm:$0xf] %v1944
        %2010 = vst [vmem:[%s2003 + $0x18] sm:$0xf] %v1945
        %2011 = vst [vmem:[%s2003 + $0x1c] sm:$0xf] %v1946
        %2012 = vst [vmem:[%s2003 + $0x20] sm:$0xf] %v1947
        %2013 = vst [vmem:[%s2003 + $0x24] sm:$0xf] %v1948
        %2014 = vst [vmem:[%s2003 + $0x28] sm:$0xf] %v1949
        %2015 = vst [vmem:[%s2003 + $0x2c] sm:$0xf] %v1950
        %2016 = vst [vmem:[%s2003 + $0x30] sm:$0xf] %v1951
        %2017 = vst [vmem:[%s2003 + $0x34] sm:$0xf] %v1952
        %2018 = vst [vmem:[%s2003 + $0x38] sm:$0xf] %v1953
        %2019 = vst [vmem:[%s2003 + $0x3c] sm:$0xf] %v1954
        %2020 = vst [vmem:[%s2003 + $0x40] sm:$0xf] %v1955
        %2021 = vst [vmem:[%s2003 + $0x44] sm:$0xf] %v1956
        %2022 = vst [vmem:[%s2003 + $0x48] sm:$0xf] %v1957
        %2023 = vst [vmem:[%s2003 + $0x4c] sm:$0xf] %v1958
        %2024 = vst [vmem:[%s2003 + $0x50] sm:$0xf] %v1959
        %2025 = vst [vmem:[%s2003 + $0x54] sm:$0xf] %v1960
        %2026 = vst [vmem:[%s2003 + $0x58] sm:$0xf] %v1961
        %2027 = vst [vmem:[%s2003 + $0x5c] sm:$0xf] %v1962
        %2028 = vst [vmem:[%s2003 + $0x60] sm:$0xf] %v1963
        %2029 = vst [vmem:[%s2003 + $0x64] sm:$0xf] %v1964
        %2030 = vst [vmem:[%s2003 + $0x68] sm:$0xf] %v1965
        %2031 = vst [vmem:[%s2003 + $0x6c] sm:$0xf] %v1966
        %2032 = vst [vmem:[%s2003 + $0x70] sm:$0xf] %v1967
        %2033 = vst [vmem:[%s2003 + $0x74] sm:$0xf] %v1968
        %2034 = vst [vmem:[%s2003 + $0x78] sm:$0xf] %v1969
        %2035 = vst [vmem:[%s2003 + $0x7c] sm:$0xf] %v1970
        %v2036 = vld [vmem:[#allocation8] sm:$0xff]
        %v2037 = vld [vmem:[#allocation8 + $0x8] sm:$0xff]
        %v2038 = vld [vmem:[#allocation8 + $0x10] sm:$0xff]
        %v2039 = vld [vmem:[#allocation8 + $0x18] sm:$0xff]
        %v2040 = vld [vmem:[#allocation8 + $0x20] sm:$0xff]
        %v2041 = vld [vmem:[#allocation8 + $0x28] sm:$0xff]
        %v2042 = vld [vmem:[#allocation8 + $0x30] sm:$0xff]
        %v2043 = vld [vmem:[#allocation8 + $0x38] sm:$0xff]
        %v2044 = vld [vmem:[#allocation8 + $0x40] sm:$0xff]
        %v2045 = vld [vmem:[#allocation8 + $0x48] sm:$0xff]
        %v2046 = vld [vmem:[#allocation8 + $0x50] sm:$0xff]
        %v2047 = vld [vmem:[#allocation8 + $0x58] sm:$0xff]
        %v2048 = vld [vmem:[#allocation8 + $0x60] sm:$0xff]
        %v2049 = vld [vmem:[#allocation8 + $0x68] sm:$0xff]
        %v2050 = vld [vmem:[#allocation8 + $0x70] sm:$0xff]
        %v2051 = vld [vmem:[#allocation8 + $0x78] sm:$0xff]
        %v2052 = vld [vmem:[#allocation8 + $0x80] sm:$0xff]
        %v2053 = vld [vmem:[#allocation8 + $0x88] sm:$0xff]
        %v2054 = vld [vmem:[#allocation8 + $0x90] sm:$0xff]
        %v2055 = vld [vmem:[#allocation8 + $0x98] sm:$0xff]
        %v2056 = vld [vmem:[#allocation8 + $0xa0] sm:$0xff]
        %v2057 = vld [vmem:[#allocation8 + $0xa8] sm:$0xff]
        %v2058 = vld [vmem:[#allocation8 + $0xb0] sm:$0xff]
        %v2059 = vld [vmem:[#allocation8 + $0xb8] sm:$0xff]
        %v2060 = vld [vmem:[#allocation8 + $0xc0] sm:$0xff]
        %v2061 = vld [vmem:[#allocation8 + $0xc8] sm:$0xff]
        %v2062 = vld [vmem:[#allocation8 + $0xd0] sm:$0xff]
        %v2063 = vld [vmem:[#allocation8 + $0xd8] sm:$0xff]
        %v2064 = vld [vmem:[#allocation8 + $0xe0] sm:$0xff]
        %v2065 = vld [vmem:[#allocation8 + $0xe8] sm:$0xff]
        %v2066 = vld [vmem:[#allocation8 + $0xf0] sm:$0xff]
        %v2067 = vld [vmem:[#allocation8 + $0xf8] sm:$0xff]
        %v2068 = vld [vmem:[%s6] sm:$0x3]
        %v2070 = vlaneseq
        %v2071 = vshrl.u32 %v2070, 7
        %v2072 = vsub.s32 0, %v2071
        %v2073 = vrot.slane %v2068, %v2072
        %v2074 = vlaneseq
        %v2075 = vshrl.u32 %v2074, 7
        %v2076 = vsub.s32 1, %v2075
        %v2077 = vrot.slane %v2068, %v2076
        %v2112 = vunpack.c.l.b16 %v2036
        %v2113 = vunpack.c.h.b16 %v2036
        %v2114 = vunpack.c.l.b16 %v2037
        %v2115 = vunpack.c.h.b16 %v2037
        %v2116 = vunpack.c.l.b16 %v2038
        %v2117 = vunpack.c.h.b16 %v2038
        %v2118 = vunpack.c.l.b16 %v2039
        %v2119 = vunpack.c.h.b16 %v2039
        %v2120 = vunpack.c.l.b16 %v2040
        %v2121 = vunpack.c.h.b16 %v2040
        %v2122 = vunpack.c.l.b16 %v2041
        %v2123 = vunpack.c.h.b16 %v2041
        %v2124 = vunpack.c.l.b16 %v2042
        %v2125 = vunpack.c.h.b16 %v2042
        %v2126 = vunpack.c.l.b16 %v2043
        %v2127 = vunpack.c.h.b16 %v2043
        %v2128 = vunpack.c.l.b16 %v2044
        %v2129 = vunpack.c.h.b16 %v2044
        %v2130 = vunpack.c.l.b16 %v2045
        %v2131 = vunpack.c.h.b16 %v2045
        %v2132 = vunpack.c.l.b16 %v2046
        %v2133 = vunpack.c.h.b16 %v2046
        %v2134 = vunpack.c.l.b16 %v2047
        %v2135 = vunpack.c.h.b16 %v2047
        %v2136 = vunpack.c.l.b16 %v2048
        %v2137 = vunpack.c.h.b16 %v2048
        %v2138 = vunpack.c.l.b16 %v2049
        %v2139 = vunpack.c.h.b16 %v2049
        %v2140 = vunpack.c.l.b16 %v2050
        %v2141 = vunpack.c.h.b16 %v2050
        %v2142 = vunpack.c.l.b16 %v2051
        %v2143 = vunpack.c.h.b16 %v2051
        %v2144 = vunpack.c.l.b16 %v2052
        %v2145 = vunpack.c.h.b16 %v2052
        %v2146 = vunpack.c.l.b16 %v2053
        %v2147 = vunpack.c.h.b16 %v2053
        %v2148 = vunpack.c.l.b16 %v2054
        %v2149 = vunpack.c.h.b16 %v2054
        %v2150 = vunpack.c.l.b16 %v2055
        %v2151 = vunpack.c.h.b16 %v2055
        %v2152 = vunpack.c.l.b16 %v2056
        %v2153 = vunpack.c.h.b16 %v2056
        %v2154 = vunpack.c.l.b16 %v2057
        %v2155 = vunpack.c.h.b16 %v2057
        %v2156 = vunpack.c.l.b16 %v2058
        %v2157 = vunpack.c.h.b16 %v2058
        %v2158 = vunpack.c.l.b16 %v2059
        %v2159 = vunpack.c.h.b16 %v2059
        %v2160 = vunpack.c.l.b16 %v2060
        %v2161 = vunpack.c.h.b16 %v2060
        %v2162 = vunpack.c.l.b16 %v2061
        %v2163 = vunpack.c.h.b16 %v2061
        %v2164 = vunpack.c.l.b16 %v2062
        %v2165 = vunpack.c.h.b16 %v2062
        %v2166 = vunpack.c.l.b16 %v2063
        %v2167 = vunpack.c.h.b16 %v2063
        %v2168 = vunpack.c.l.b16 %v2064
        %v2169 = vunpack.c.h.b16 %v2064
        %v2170 = vunpack.c.l.b16 %v2065
        %v2171 = vunpack.c.h.b16 %v2065
        %v2172 = vunpack.c.l.b16 %v2066
        %v2173 = vunpack.c.h.b16 %v2066
        %v2174 = vunpack.c.l.b16 %v2067
        %v2175 = vunpack.c.h.b16 %v2067
        %v2176 = vpack.c.b16 %v2114, %v2112
        %v2177 = vpack.c.b16 %v2115, %v2113
        %v2178 = vpack.c.b16 %v2118, %v2116
        %v2179 = vpack.c.b16 %v2119, %v2117
        %v2180 = vpack.c.b16 %v2122, %v2120
        %v2181 = vpack.c.b16 %v2123, %v2121
        %v2182 = vpack.c.b16 %v2126, %v2124
        %v2183 = vpack.c.b16 %v2127, %v2125
        %v2184 = vpack.c.b16 %v2130, %v2128
        %v2185 = vpack.c.b16 %v2131, %v2129
        %v2186 = vpack.c.b16 %v2134, %v2132
        %v2187 = vpack.c.b16 %v2135, %v2133
        %v2188 = vpack.c.b16 %v2138, %v2136
        %v2189 = vpack.c.b16 %v2139, %v2137
        %v2190 = vpack.c.b16 %v2142, %v2140
        %v2191 = vpack.c.b16 %v2143, %v2141
        %v2192 = vpack.c.b16 %v2146, %v2144
        %v2193 = vpack.c.b16 %v2147, %v2145
        %v2194 = vpack.c.b16 %v2150, %v2148
        %v2195 = vpack.c.b16 %v2151, %v2149
        %v2196 = vpack.c.b16 %v2154, %v2152
        %v2197 = vpack.c.b16 %v2155, %v2153
        %v2198 = vpack.c.b16 %v2158, %v2156
        %v2199 = vpack.c.b16 %v2159, %v2157
        %v2200 = vpack.c.b16 %v2162, %v2160
        %v2201 = vpack.c.b16 %v2163, %v2161
        %v2202 = vpack.c.b16 %v2166, %v2164
        %v2203 = vpack.c.b16 %v2167, %v2165
        %v2204 = vpack.c.b16 %v2170, %v2168
        %v2205 = vpack.c.b16 %v2171, %v2169
        %v2206 = vpack.c.b16 %v2174, %v2172
        %v2207 = vpack.c.b16 %v2175, %v2173
        %2240 = vmatprep.subr.bf16.mxu0 %v2177
        %2241 = vmatpush1.bf16.msra.mxu0 %v2176
        %2242 = vmatprep.subr.bf16.mxu0 %v2179
        %2243 = vmatpush1.bf16.msra.mxu0 %v2178
        %2244 = vmatprep.subr.bf16.mxu0 %v2181
        %2245 = vmatpush1.bf16.msra.mxu0 %v2180
        %2246 = vmatprep.subr.bf16.mxu0 %v2183
        %2247 = vmatpush1.bf16.msra.mxu0 %v2182
        %2248 = vmatprep.subr.bf16.mxu0 %v2185
        %2249 = vmatpush1.bf16.msra.mxu0 %v2184
        %2250 = vmatprep.subr.bf16.mxu0 %v2187
        %2251 = vmatpush1.bf16.msra.mxu0 %v2186
        %2252 = vmatprep.subr.bf16.mxu0 %v2189
        %2253 = vmatpush1.bf16.msra.mxu0 %v2188
        %2254 = vmatprep.subr.bf16.mxu0 %v2191
        %2255 = vmatpush1.bf16.msra.mxu0 %v2190
        %2256 = vmatprep.subr.bf16.mxu0 %v2193
        %2257 = vmatpush1.bf16.msra.mxu0 %v2192
        %2258 = vmatprep.subr.bf16.mxu0 %v2195
        %2259 = vmatpush1.bf16.msra.mxu0 %v2194
        %2260 = vmatprep.subr.bf16.mxu0 %v2197
        %2261 = vmatpush1.bf16.msra.mxu0 %v2196
        %2262 = vmatprep.subr.bf16.mxu0 %v2199
        %2263 = vmatpush1.bf16.msra.mxu0 %v2198
        %2264 = vmatprep.subr.bf16.mxu0 %v2201
        %2265 = vmatpush1.bf16.msra.mxu0 %v2200
        %2266 = vmatprep.subr.bf16.mxu0 %v2203
        %2267 = vmatpush1.bf16.msra.mxu0 %v2202
        %2268 = vmatprep.subr.bf16.mxu0 %v2205
        %2269 = vmatpush1.bf16.msra.mxu0 %v2204
        %2270 = vmatprep.subr.bf16.mxu0 %v2207
        %2271 = vmatpush1.bf16.msra.mxu0 %v2206
        %2272 = vmatprep.mubr.bf16.mxu0 %v505
        %2273 = vmatmul.mubr.bf16.gmra.mrb[0].mxu0 %v504
        %v2274 = vpop.f32.mrb[0].mxu0
        %v2275 = vadd.f32 %v2073, %v2274
        %v2276 = vpop.f32.mrb[0].mxu0
        %v2277 = vadd.f32 %v2077, %v2276
        %v2278 = vpop.f32.mrb[0].mxu0
        %v2279 = vadd.f32 %v2073, %v2278
        %v2280 = vpop.f32.mrb[0].mxu0
        %v2281 = vadd.f32 %v2077, %v2280
        %2282 = vmatprep.mubr.bf16.mxu0 %v507
        %2283 = vmatmul.mubr.bf16.gmra.mrb[0].mxu0 %v506
        %v2284 = vpop.f32.mrb[0].mxu0
        %v2285 = vadd.f32 %v2073, %v2284
        %v2286 = vpop.f32.mrb[0].mxu0
        %v2287 = vadd.f32 %v2077, %v2286
        %v2288 = vpop.f32.mrb[0].mxu0
        %v2289 = vadd.f32 %v2073, %v2288
        %v2290 = vpop.f32.mrb[0].mxu0
        %v2291 = vadd.f32 %v2077, %v2290
        %2292 = vmatprep.mubr.bf16.mxu0 %v509
        %2293 = vmatmul.mubr.bf16.gmra.mrb[0].mxu0 %v508
        %v2294 = vpop.f32.mrb[0].mxu0
        %v2295 = vadd.f32 %v2073, %v2294
        %v2296 = vpop.f32.mrb[0].mxu0
        %v2297 = vadd.f32 %v2077, %v2296
        %v2298 = vpop.f32.mrb[0].mxu0
        %v2299 = vadd.f32 %v2073, %v2298
        %v2300 = vpop.f32.mrb[0].mxu0
        %v2301 = vadd.f32 %v2077, %v2300
        %2302 = vmatprep.mubr.bf16.mxu0 %v511
        %2303 = vmatmul.mubr.bf16.gmra.mrb[0].mxu0 %v510
        %v2304 = vpop.f32.mrb[0].mxu0
        %v2305 = vadd.f32 %v2073, %v2304
        %v2306 = vpop.f32.mrb[0].mxu0
        %v2307 = vadd.f32 %v2077, %v2306
        %v2308 = vpop.f32.mrb[0].mxu0
        %v2309 = vadd.f32 %v2073, %v2308
        %v2310 = vpop.f32.mrb[0].mxu0
        %v2311 = vadd.f32 %v2077, %v2310
        %2312 = vmatprep.mubr.bf16.mxu0 %v513
        %2313 = vmatmul.mubr.bf16.gmra.mrb[0].mxu0 %v512
        %v2314 = vpop.f32.mrb[0].mxu0
        %v2315 = vadd.f32 %v2073, %v2314
        %v2316 = vpop.f32.mrb[0].mxu0
        %v2317 = vadd.f32 %v2077, %v2316
        %v2318 = vpop.f32.mrb[0].mxu0
        %v2319 = vadd.f32 %v2073, %v2318
        %v2320 = vpop.f32.mrb[0].mxu0
        %v2321 = vadd.f32 %v2077, %v2320
        %2322 = vmatprep.mubr.bf16.mxu0 %v515
        %2323 = vmatmul.mubr.bf16.gmra.mrb[0].mxu0 %v514
        %v2324 = vpop.f32.mrb[0].mxu0
        %v2325 = vadd.f32 %v2073, %v2324
        %v2326 = vpop.f32.mrb[0].mxu0
        %v2327 = vadd.f32 %v2077, %v2326
        %v2328 = vpop.f32.mrb[0].mxu0
        %v2329 = vadd.f32 %v2073, %v2328
        %v2330 = vpop.f32.mrb[0].mxu0
        %v2331 = vadd.f32 %v2077, %v2330
        %2332 = vmatprep.mubr.bf16.mxu0 %v517
        %2333 = vmatmul.mubr.bf16.gmra.mrb[0].mxu0 %v516
        %v2334 = vpop.f32.mrb[0].mxu0
        %v2335 = vadd.f32 %v2073, %v2334
        %v2336 = vpop.f32.mrb[0].mxu0
        %v2337 = vadd.f32 %v2077, %v2336
        %v2338 = vpop.f32.mrb[0].mxu0
        %v2339 = vadd.f32 %v2073, %v2338
        %v2340 = vpop.f32.mrb[0].mxu0
        %v2341 = vadd.f32 %v2077, %v2340
        %2342 = vmatprep.mubr.bf16.mxu0 %v519
        %2343 = vmatmul.mubr.bf16.gmra.mrb[0].mxu0 %v518
        %v2344 = vpop.f32.mrb[0].mxu0
        %v2345 = vadd.f32 %v2073, %v2344
        %v2346 = vpop.f32.mrb[0].mxu0
        %v2347 = vadd.f32 %v2077, %v2346
        %v2348 = vpop.f32.mrb[0].mxu0
        %v2349 = vadd.f32 %v2073, %v2348
        %v2350 = vpop.f32.mrb[0].mxu0
        %v2351 = vadd.f32 %v2077, %v2350
        %2352 = vmatprep.mubr.bf16.mxu0 %v521
        %2353 = vmatmul.mubr.bf16.gmra.mrb[0].mxu0 %v520
        %v2354 = vpop.f32.mrb[0].mxu0
        %v2355 = vadd.f32 %v2073, %v2354
        %v2356 = vpop.f32.mrb[0].mxu0
        %v2357 = vadd.f32 %v2077, %v2356
        %v2358 = vpop.f32.mrb[0].mxu0
        %v2359 = vadd.f32 %v2073, %v2358
        %v2360 = vpop.f32.mrb[0].mxu0
        %v2361 = vadd.f32 %v2077, %v2360
        %2362 = vmatprep.mubr.bf16.mxu0 %v523
        %2363 = vmatmul.mubr.bf16.gmra.mrb[0].mxu0 %v522
        %v2364 = vpop.f32.mrb[0].mxu0
        %v2365 = vadd.f32 %v2073, %v2364
        %v2366 = vpop.f32.mrb[0].mxu0
        %v2367 = vadd.f32 %v2077, %v2366
        %v2368 = vpop.f32.mrb[0].mxu0
        %v2369 = vadd.f32 %v2073, %v2368
        %v2370 = vpop.f32.mrb[0].mxu0
        %v2371 = vadd.f32 %v2077, %v2370
        %2372 = vmatprep.mubr.bf16.mxu0 %v525
        %2373 = vmatmul.mubr.bf16.gmra.mrb[0].mxu0 %v524
        %v2374 = vpop.f32.mrb[0].mxu0
        %v2375 = vadd.f32 %v2073, %v2374
        %v2376 = vpop.f32.mrb[0].mxu0
        %v2377 = vadd.f32 %v2077, %v2376
        %v2378 = vpop.f32.mrb[0].mxu0
        %v2379 = vadd.f32 %v2073, %v2378
        %v2380 = vpop.f32.mrb[0].mxu0
        %v2381 = vadd.f32 %v2077, %v2380
        %2382 = vmatprep.mubr.bf16.mxu0 %v527
        %2383 = vmatmul.mubr.bf16.gmra.mrb[0].mxu0 %v526
        %v2384 = vpop.f32.mrb[0].mxu0
        %v2385 = vadd.f32 %v2073, %v2384
        %v2386 = vpop.f32.mrb[0].mxu0
        %v2387 = vadd.f32 %v2077, %v2386
        %v2388 = vpop.f32.mrb[0].mxu0
        %v2389 = vadd.f32 %v2073, %v2388
        %v2390 = vpop.f32.mrb[0].mxu0
        %v2391 = vadd.f32 %v2077, %v2390
        %2392 = vmatprep.mubr.bf16.mxu0 %v529
        %2393 = vmatmul.mubr.bf16.gmra.mrb[0].mxu0 %v528
        %v2394 = vpop.f32.mrb[0].mxu0
        %v2395 = vadd.f32 %v2073, %v2394
        %v2396 = vpop.f32.mrb[0].mxu0
        %v2397 = vadd.f32 %v2077, %v2396
        %v2398 = vpop.f32.mrb[0].mxu0
        %v2399 = vadd.f32 %v2073, %v2398
        %v2400 = vpop.f32.mrb[0].mxu0
        %v2401 = vadd.f32 %v2077, %v2400
        %2402 = vmatprep.mubr.bf16.mxu0 %v531
        %2403 = vmatmul.mubr.bf16.gmra.mrb[0].mxu0 %v530
        %v2404 = vpop.f32.mrb[0].mxu0
        %v2405 = vadd.f32 %v2073, %v2404
        %v2406 = vpop.f32.mrb[0].mxu0
        %v2407 = vadd.f32 %v2077, %v2406
        %v2408 = vpop.f32.mrb[0].mxu0
        %v2409 = vadd.f32 %v2073, %v2408
        %v2410 = vpop.f32.mrb[0].mxu0
        %v2411 = vadd.f32 %v2077, %v2410
        %2412 = vmatprep.mubr.bf16.mxu0 %v533
        %2413 = vmatmul.mubr.bf16.gmra.mrb[0].mxu0 %v532
        %v2414 = vpop.f32.mrb[0].mxu0
        %v2415 = vadd.f32 %v2073, %v2414
        %v2416 = vpop.f32.mrb[0].mxu0
        %v2417 = vadd.f32 %v2077, %v2416
        %v2418 = vpop.f32.mrb[0].mxu0
        %v2419 = vadd.f32 %v2073, %v2418
        %v2420 = vpop.f32.mrb[0].mxu0
        %v2421 = vadd.f32 %v2077, %v2420
        %2422 = vmatprep.mubr.bf16.mxu0 %v535
        %2423 = vmatmul.mubr.bf16.gmra.mrb[0].mxu0 %v534
        %v2424 = vpop.f32.mrb[0].mxu0
        %v2425 = vadd.f32 %v2073, %v2424
        %v2426 = vpop.f32.mrb[0].mxu0
        %v2427 = vadd.f32 %v2077, %v2426
        %v2428 = vpop.f32.mrb[0].mxu0
        %v2429 = vadd.f32 %v2073, %v2428
        %v2430 = vpop.f32.mrb[0].mxu0
        %v2431 = vadd.f32 %v2077, %v2430
        %2432 = vdwg.mxu0
        %v2433 = vpack.c.bf16 %v2279, %v2275
        %v2434 = vpack.c.bf16 %v2281, %v2277
        %v2435 = vpack.c.bf16 %v2289, %v2285
        %v2436 = vpack.c.bf16 %v2291, %v2287
        %v2437 = vpack.c.bf16 %v2299, %v2295
        %v2438 = vpack.c.bf16 %v2301, %v2297
        %v2439 = vpack.c.bf16 %v2309, %v2305
        %v2440 = vpack.c.bf16 %v2311, %v2307
        %v2441 = vpack.c.bf16 %v2319, %v2315
        %v2442 = vpack.c.bf16 %v2321, %v2317
        %v2443 = vpack.c.bf16 %v2329, %v2325
        %v2444 = vpack.c.bf16 %v2331, %v2327
        %v2445 = vpack.c.bf16 %v2339, %v2335
        %v2446 = vpack.c.bf16 %v2341, %v2337
        %v2447 = vpack.c.bf16 %v2349, %v2345
        %v2448 = vpack.c.bf16 %v2351, %v2347
        %v2449 = vpack.c.bf16 %v2359, %v2355
        %v2450 = vpack.c.bf16 %v2361, %v2357
        %v2451 = vpack.c.bf16 %v2369, %v2365
        %v2452 = vpack.c.bf16 %v2371, %v2367
        %v2453 = vpack.c.bf16 %v2379, %v2375
        %v2454 = vpack.c.bf16 %v2381, %v2377
        %v2455 = vpack.c.bf16 %v2389, %v2385
        %v2456 = vpack.c.bf16 %v2391, %v2387
        %v2457 = vpack.c.bf16 %v2399, %v2395
        %v2458 = vpack.c.bf16 %v2401, %v2397
        %v2459 = vpack.c.bf16 %v2409, %v2405
        %v2460 = vpack.c.bf16 %v2411, %v2407
        %v2461 = vpack.c.bf16 %v2419, %v2415
        %v2462 = vpack.c.bf16 %v2421, %v2417
        %v2463 = vpack.c.bf16 %v2429, %v2425
        %v2464 = vpack.c.bf16 %v2431, %v2427
        %v2481 = vunpack.c.l.b16 %v2433
        %v2482 = vunpack.c.h.b16 %v2433
        %v2483 = vunpack.c.l.b16 %v2435
        %v2484 = vunpack.c.h.b16 %v2435
        %v2485 = vunpack.c.l.b16 %v2437
        %v2486 = vunpack.c.h.b16 %v2437
        %v2487 = vunpack.c.l.b16 %v2439
        %v2488 = vunpack.c.h.b16 %v2439
        %v2489 = vunpack.c.l.b16 %v2441
        %v2490 = vunpack.c.h.b16 %v2441
        %v2491 = vunpack.c.l.b16 %v2443
        %v2492 = vunpack.c.h.b16 %v2443
        %v2493 = vunpack.c.l.b16 %v2445
        %v2494 = vunpack.c.h.b16 %v2445
        %v2495 = vunpack.c.l.b16 %v2447
        %v2496 = vunpack.c.h.b16 %v2447
        %v2497 = vunpack.c.l.b16 %v2449
        %v2498 = vunpack.c.h.b16 %v2449
        %v2499 = vunpack.c.l.b16 %v2451
        %v2500 = vunpack.c.h.b16 %v2451
        %v2501 = vunpack.c.l.b16 %v2453
        %v2502 = vunpack.c.h.b16 %v2453
        %v2503 = vunpack.c.l.b16 %v2455
        %v2504 = vunpack.c.h.b16 %v2455
        %v2505 = vunpack.c.l.b16 %v2457
        %v2506 = vunpack.c.h.b16 %v2457
        %v2507 = vunpack.c.l.b16 %v2459
        %v2508 = vunpack.c.h.b16 %v2459
        %v2509 = vunpack.c.l.b16 %v2461
        %v2510 = vunpack.c.h.b16 %v2461
        %v2511 = vunpack.c.l.b16 %v2463
        %v2512 = vunpack.c.h.b16 %v2463
        %v2513 = vpack.c.b16 %v2481, %v2481
        %v2514 = vpack.c.b16 %v2482, %v2482
        %v2515 = vpack.c.b16 %v2483, %v2483
        %v2516 = vpack.c.b16 %v2484, %v2484
        %v2517 = vpack.c.b16 %v2485, %v2485
        %v2518 = vpack.c.b16 %v2486, %v2486
        %v2519 = vpack.c.b16 %v2487, %v2487
        %v2520 = vpack.c.b16 %v2488, %v2488
        %v2521 = vpack.c.b16 %v2489, %v2489
        %v2522 = vpack.c.b16 %v2490, %v2490
        %v2523 = vpack.c.b16 %v2491, %v2491
        %v2524 = vpack.c.b16 %v2492, %v2492
        %v2525 = vpack.c.b16 %v2493, %v2493
        %v2526 = vpack.c.b16 %v2494, %v2494
        %v2527 = vpack.c.b16 %v2495, %v2495
        %v2528 = vpack.c.b16 %v2496, %v2496
        %v2529 = vpack.c.b16 %v2497, %v2497
        %v2530 = vpack.c.b16 %v2498, %v2498
        %v2531 = vpack.c.b16 %v2499, %v2499
        %v2532 = vpack.c.b16 %v2500, %v2500
        %v2533 = vpack.c.b16 %v2501, %v2501
        %v2534 = vpack.c.b16 %v2502, %v2502
        %v2535 = vpack.c.b16 %v2503, %v2503
        %v2536 = vpack.c.b16 %v2504, %v2504
        %v2537 = vpack.c.b16 %v2505, %v2505
        %v2538 = vpack.c.b16 %v2506, %v2506
        %v2539 = vpack.c.b16 %v2507, %v2507
        %v2540 = vpack.c.b16 %v2508, %v2508
        %v2541 = vpack.c.b16 %v2509, %v2509
        %v2542 = vpack.c.b16 %v2510, %v2510
        %v2543 = vpack.c.b16 %v2511, %v2511
        %v2544 = vpack.c.b16 %v2512, %v2512
        %2577 = vst [vmem:[%s435] sm:$0xf] %v2513
        %2578 = vst [vmem:[%s435 + $0x4] sm:$0xf] %v2514
        %2579 = vst [vmem:[%s435 + $0x8] sm:$0xf] %v2515
        %2580 = vst [vmem:[%s435 + $0xc] sm:$0xf] %v2516
        %2581 = vst [vmem:[%s435 + $0x10] sm:$0xf] %v2517
        %2582 = vst [vmem:[%s435 + $0x14] sm:$0xf] %v2518
        %2583 = vst [vmem:[%s435 + $0x18] sm:$0xf] %v2519
        %2584 = vst [vmem:[%s435 + $0x1c] sm:$0xf] %v2520
        %2585 = vst [vmem:[%s435 + $0x20] sm:$0xf] %v2521
        %2586 = vst [vmem:[%s435 + $0x24] sm:$0xf] %v2522
        %2587 = vst [vmem:[%s435 + $0x28] sm:$0xf] %v2523
        %2588 = vst [vmem:[%s435 + $0x2c] sm:$0xf] %v2524
        %2589 = vst [vmem:[%s435 + $0x30] sm:$0xf] %v2525
        %2590 = vst [vmem:[%s435 + $0x34] sm:$0xf] %v2526
        %2591 = vst [vmem:[%s435 + $0x38] sm:$0xf] %v2527
        %2592 = vst [vmem:[%s435 + $0x3c] sm:$0xf] %v2528
        %2593 = vst [vmem:[%s435 + $0x40] sm:$0xf] %v2529
        %2594 = vst [vmem:[%s435 + $0x44] sm:$0xf] %v2530
        %2595 = vst [vmem:[%s435 + $0x48] sm:$0xf] %v2531
        %2596 = vst [vmem:[%s435 + $0x4c] sm:$0xf] %v2532
        %2597 = vst [vmem:[%s435 + $0x50] sm:$0xf] %v2533
        %2598 = vst [vmem:[%s435 + $0x54] sm:$0xf] %v2534
        %2599 = vst [vmem:[%s435 + $0x58] sm:$0xf] %v2535
        %2600 = vst [vmem:[%s435 + $0x5c] sm:$0xf] %v2536
        %2601 = vst [vmem:[%s435 + $0x60] sm:$0xf] %v2537
        %2602 = vst [vmem:[%s435 + $0x64] sm:$0xf] %v2538
        %2603 = vst [vmem:[%s435 + $0x68] sm:$0xf] %v2539
        %2604 = vst [vmem:[%s435 + $0x6c] sm:$0xf] %v2540
        %2605 = vst [vmem:[%s435 + $0x70] sm:$0xf] %v2541
        %2606 = vst [vmem:[%s435 + $0x74] sm:$0xf] %v2542
        %2607 = vst [vmem:[%s435 + $0x78] sm:$0xf] %v2543
        %2608 = vst [vmem:[%s435 + $0x7c] sm:$0xf] %v2544
        %v2625 = vunpack.c.l.b16 %v2434
        %v2626 = vunpack.c.h.b16 %v2434
        %v2627 = vunpack.c.l.b16 %v2436
        %v2628 = vunpack.c.h.b16 %v2436
        %v2629 = vunpack.c.l.b16 %v2438
        %v2630 = vunpack.c.h.b16 %v2438
        %v2631 = vunpack.c.l.b16 %v2440
        %v2632 = vunpack.c.h.b16 %v2440
        %v2633 = vunpack.c.l.b16 %v2442
        %v2634 = vunpack.c.h.b16 %v2442
        %v2635 = vunpack.c.l.b16 %v2444
        %v2636 = vunpack.c.h.b16 %v2444
        %v2637 = vunpack.c.l.b16 %v2446
        %v2638 = vunpack.c.h.b16 %v2446
        %v2639 = vunpack.c.l.b16 %v2448
        %v2640 = vunpack.c.h.b16 %v2448
        %v2641 = vunpack.c.l.b16 %v2450
        %v2642 = vunpack.c.h.b16 %v2450
        %v2643 = vunpack.c.l.b16 %v2452
        %v2644 = vunpack.c.h.b16 %v2452
        %v2645 = vunpack.c.l.b16 %v2454
        %v2646 = vunpack.c.h.b16 %v2454
        %v2647 = vunpack.c.l.b16 %v2456
        %v2648 = vunpack.c.h.b16 %v2456
        %v2649 = vunpack.c.l.b16 %v2458
        %v2650 = vunpack.c.h.b16 %v2458
        %v2651 = vunpack.c.l.b16 %v2460
        %v2652 = vunpack.c.h.b16 %v2460
        %v2653 = vunpack.c.l.b16 %v2462
        %v2654 = vunpack.c.h.b16 %v2462
        %v2655 = vunpack.c.l.b16 %v2464
        %v2656 = vunpack.c.h.b16 %v2464
        %v2657 = vpack.c.b16 %v2625, %v2625
        %v2658 = vpack.c.b16 %v2626, %v2626
        %v2659 = vpack.c.b16 %v2627, %v2627
        %v2660 = vpack.c.b16 %v2628, %v2628
        %v2661 = vpack.c.b16 %v2629, %v2629
        %v2662 = vpack.c.b16 %v2630, %v2630
        %v2663 = vpack.c.b16 %v2631, %v2631
        %v2664 = vpack.c.b16 %v2632, %v2632
        %v2665 = vpack.c.b16 %v2633, %v2633
        %v2666 = vpack.c.b16 %v2634, %v2634
        %v2667 = vpack.c.b16 %v2635, %v2635
        %v2668 = vpack.c.b16 %v2636, %v2636
        %v2669 = vpack.c.b16 %v2637, %v2637
        %v2670 = vpack.c.b16 %v2638, %v2638
        %v2671 = vpack.c.b16 %v2639, %v2639
        %v2672 = vpack.c.b16 %v2640, %v2640
        %v2673 = vpack.c.b16 %v2641, %v2641
        %v2674 = vpack.c.b16 %v2642, %v2642
        %v2675 = vpack.c.b16 %v2643, %v2643
        %v2676 = vpack.c.b16 %v2644, %v2644
        %v2677 = vpack.c.b16 %v2645, %v2645
        %v2678 = vpack.c.b16 %v2646, %v2646
        %v2679 = vpack.c.b16 %v2647, %v2647
        %v2680 = vpack.c.b16 %v2648, %v2648
        %v2681 = vpack.c.b16 %v2649, %v2649
        %v2682 = vpack.c.b16 %v2650, %v2650
        %v2683 = vpack.c.b16 %v2651, %v2651
        %v2684 = vpack.c.b16 %v2652, %v2652
        %v2685 = vpack.c.b16 %v2653, %v2653
        %v2686 = vpack.c.b16 %v2654, %v2654
        %v2687 = vpack.c.b16 %v2655, %v2655
        %v2688 = vpack.c.b16 %v2656, %v2656
        %s2721 = scalar_lea.vmem %s435, 128 [#allocation13]
        %2722 = vst [vmem:[%s2721] sm:$0xf] %v2657
        %2723 = vst [vmem:[%s2721 + $0x4] sm:$0xf] %v2658
        %2724 = vst [vmem:[%s2721 + $0x8] sm:$0xf] %v2659
        %2725 = vst [vmem:[%s2721 + $0xc] sm:$0xf] %v2660
        %2726 = vst [vmem:[%s2721 + $0x10] sm:$0xf] %v2661
        %2727 = vst [vmem:[%s2721 + $0x14] sm:$0xf] %v2662
        %2728 = vst [vmem:[%s2721 + $0x18] sm:$0xf] %v2663
        %2729 = vst [vmem:[%s2721 + $0x1c] sm:$0xf] %v2664
        %2730 = vst [vmem:[%s2721 + $0x20] sm:$0xf] %v2665
        %2731 = vst [vmem:[%s2721 + $0x24] sm:$0xf] %v2666
        %2732 = vst [vmem:[%s2721 + $0x28] sm:$0xf] %v2667
        %2733 = vst [vmem:[%s2721 + $0x2c] sm:$0xf] %v2668
        %2734 = vst [vmem:[%s2721 + $0x30] sm:$0xf] %v2669
        %2735 = vst [vmem:[%s2721 + $0x34] sm:$0xf] %v2670
        %2736 = vst [vmem:[%s2721 + $0x38] sm:$0xf] %v2671
        %2737 = vst [vmem:[%s2721 + $0x3c] sm:$0xf] %v2672
        %2738 = vst [vmem:[%s2721 + $0x40] sm:$0xf] %v2673
        %2739 = vst [vmem:[%s2721 + $0x44] sm:$0xf] %v2674
        %2740 = vst [vmem:[%s2721 + $0x48] sm:$0xf] %v2675
        %2741 = vst [vmem:[%s2721 + $0x4c] sm:$0xf] %v2676
        %2742 = vst [vmem:[%s2721 + $0x50] sm:$0xf] %v2677
        %2743 = vst [vmem:[%s2721 + $0x54] sm:$0xf] %v2678
        %2744 = vst [vmem:[%s2721 + $0x58] sm:$0xf] %v2679
        %2745 = vst [vmem:[%s2721 + $0x5c] sm:$0xf] %v2680
        %2746 = vst [vmem:[%s2721 + $0x60] sm:$0xf] %v2681
        %2747 = vst [vmem:[%s2721 + $0x64] sm:$0xf] %v2682
        %2748 = vst [vmem:[%s2721 + $0x68] sm:$0xf] %v2683
        %2749 = vst [vmem:[%s2721 + $0x6c] sm:$0xf] %v2684
        %2750 = vst [vmem:[%s2721 + $0x70] sm:$0xf] %v2685
        %2751 = vst [vmem:[%s2721 + $0x74] sm:$0xf] %v2686
        %2752 = vst [vmem:[%s2721 + $0x78] sm:$0xf] %v2687
        %2753 = vst [vmem:[%s2721 + $0x7c] sm:$0xf] %v2688
        %s2754 = sand.u32 %s208, 1
        %s2755 = scalar_lea.sflag [#allocation4], %s2754
        %s2756 = sand.u32 %s208, 1
        %s2757 = smul.addr %s2756, 256
        %s2758 = scalar_lea.vmem [#allocation10], %s2757
        %s2759 = sand.u32 %s32, 1
        %s2760 = scalar_lea.sflag [#allocation12], %s2759
        %s2761 = sand.u32 %s236, 1
        %s2762 = smul.addr %s2761, 256
        %s2763 = scalar_lea.vmem [#allocation11], %s2762
        %s2764 = sand.u32 %s32, 1
        %s2765 = scalar_lea.sflag [#allocation12], %s2764
        %s2766 = sand.u32 %s264, 1
        %s2767 = smul.addr %s2766, 256
        %s2768 = scalar_lea.vmem [#allocation13], %s2767
        // Predicated region
        $region65: #{tpu_custom_call.1} parent=47 // pred_check
          %p2769 = pneg %p218
        $region66: #{tpu_custom_call.1} parent=47 // pred_check_branch
          %2771 = sbr.rel (%p2769) target = $region68
        $region67: #{tpu_custom_call.1} parent=47 // pred_region
          %s2772 = smul.u32 32, %s37
          %s2774 = ssub.s32 4096, 4096
          %2775 = vsyncadd %s2755, %s2774
          %s2776 = smul.addr %s36, 64
          %s2777 = sadd.s32 %s2772, %s2776
          %s2778 = smul.addr %s2777, 64
          %s2779 = scalar_lea.hbm %s7, %s2778
          %s2780 = sshll.u32 %s2758, 4
          %s2781 = int_to_ptr.vmem [resolvable:$true] %s2780
          %2786 = dma.vmem_to_hbm [thread:$0]  %s2781, 4096, %s2779, %s2755, 64, 64, 4
        $region68: #{tpu_custom_call.1} parent=47 // pred_fallthru
          _
        // Predicated region
        $region69: #{tpu_custom_call.1} parent=47 // pred_check
          %p2787 = pneg %p246
        $region70: #{tpu_custom_call.1} parent=47 // pred_check_branch
          %2789 = sbr.rel (%p2787) target = $region72
        $region71: #{tpu_custom_call.1} parent=47 // pred_region
          %s2790 = smul.u32 32, %s37
          %s2792 = ssub.s32 4096, 4096
          %2793 = vsyncadd %s2760, %s2792
          %s2794 = smul.addr %s36, 64
          %s2795 = sadd.s32 %s2790, %s2794
          %s2796 = smul.addr %s2795, 64
          %s2797 = scalar_lea.hbm %s8, %s2796
          %s2798 = sshll.u32 %s2763, 4
          %s2799 = int_to_ptr.vmem [resolvable:$true] %s2798
          %2804 = dma.vmem_to_hbm [thread:$0]  %s2799, 4096, %s2797, %s2760, 64, 64, 4
        $region72: #{tpu_custom_call.1} parent=47 // pred_fallthru
          _
        // Predicated region
        $region73: #{tpu_custom_call.1} parent=47 // pred_check
          %p2805 = pneg %p274
        $region74: #{tpu_custom_call.1} parent=47 // pred_check_branch
          %2807 = sbr.rel (%p2805) target = $region76
        $region75: #{tpu_custom_call.1} parent=47 // pred_region
          %s2808 = smul.u32 32, %s37
          %s2810 = ssub.s32 4096, 4096
          %2811 = vsyncadd %s2765, %s2810
          %s2812 = smul.addr %s36, 64
          %s2813 = sadd.s32 %s2808, %s2812
          %s2814 = smul.addr %s2813, 64
          %s2815 = scalar_lea.hbm %s9, %s2814
          %s2816 = sshll.u32 %s2768, 4
          %s2817 = int_to_ptr.vmem [resolvable:$true] %s2816
          %2822 = dma.vmem_to_hbm [thread:$0]  %s2817, 4096, %s2815, %s2765, 64, 64, 4
        $region76: #{tpu_custom_call.1} parent=47 // pred_fallthru
          _
      $region48: #{tpu_custom_call.1} parent=5 // pred_fallthru
        _
      %p2823 = scmp.le.s32.totalorder 2, %s27
      // Predicated region
      $region77: #{tpu_custom_call.1} parent=5 // pred_check
        %p2824 = pneg %p2823
      $region78: #{tpu_custom_call.1} parent=5 // pred_check_branch
        %2826 = sbr.rel (%p2824) target = $region80
      $region79: #{tpu_custom_call.1} parent=5 // pred_region
        %s2827 = ssub.s32 %s27, 2
        // Predicated region
        $region81: #{tpu_custom_call.1} parent=79 // pred_check
          %p2828 = pneg %p224
        $region82: #{tpu_custom_call.1} parent=79 // pred_check_branch
          %2830 = sbr.rel (%p2828) target = $region84
        $region83: #{tpu_custom_call.1} parent=79 // pred_region
          %s2831 = sand.u32 %s209, 1
          %s2832 = scalar_lea.sflag [#allocation4], %s2831
          %s2833 = sand.u32 %s209, 1
          %s2834 = smul.addr %s2833, 256
          %s2835 = scalar_lea.vmem [#allocation10], %s2834
          %2836 = dma.done %s2832, 4096
        $region84: #{tpu_custom_call.1} parent=79 // pred_fallthru
          _
        // Predicated region
        $region85: #{tpu_custom_call.1} parent=79 // pred_check
          %p2837 = pneg %p252
        $region86: #{tpu_custom_call.1} parent=79 // pred_check_branch
          %2839 = sbr.rel (%p2837) target = $region88
        $region87: #{tpu_custom_call.1} parent=79 // pred_region
          %s2840 = sand.u32 %s33, 1
          %s2841 = scalar_lea.sflag [#allocation12], %s2840
          %s2842 = sand.u32 %s237, 1
          %s2843 = smul.addr %s2842, 256
          %s2844 = scalar_lea.vmem [#allocation11], %s2843
          %2845 = dma.done %s2841, 4096
        $region88: #{tpu_custom_call.1} parent=79 // pred_fallthru
          _
        // Predicated region
        $region89: #{tpu_custom_call.1} parent=79 // pred_check
          %p2846 = pneg %p280
        $region90: #{tpu_custom_call.1} parent=79 // pred_check_branch
          %2848 = sbr.rel (%p2846) target = $region92
        $region91: #{tpu_custom_call.1} parent=79 // pred_region
          %s2849 = sand.u32 %s33, 1
          %s2850 = scalar_lea.sflag [#allocation12], %s2849
          %s2851 = sand.u32 %s265, 1
          %s2852 = smul.addr %s2851, 256
          %s2853 = scalar_lea.vmem [#allocation13], %s2852
          %2854 = dma.done %s2850, 4096
        $region92: #{tpu_custom_call.1} parent=79 // pred_fallthru
          _
      $region80: #{tpu_custom_call.1} parent=5 // pred_fallthru
        _
    $region6: #{tpu_custom_call.1} parent=1 // loop_footer
      %s31 = sadd.s32 1, %s27
    $region7: #{tpu_custom_call.1} parent=1 // loop_footer_branch
      %26 = sbr.rel target = $region3
    $region8: #{tpu_custom_call.1} parent=1 // loop_exit
      _
    %2855 = vsyncpa [#allocation3], 1
    %s2856 = scalar_lea.sflag [#allocation3], 1
    %2857 = vsyncpa %s2856, 1
    %2858 = vsyncpa [#allocation6], 1
    %2859 = vsyncpa [#allocation9], 1
    %2860 = vsyncpa [#allocation4], 1
    %s2861 = scalar_lea.sflag [#allocation4], 1
    %2862 = vsyncpa %s2861, 1
    %2863 = vsyncpa [#allocation12], 1
    %s2864 = scalar_lea.sflag [#allocation12], 1
    %2865 = vsyncpa %s2864, 1

</llo_original>
